<compile_context>
chip_gen: v7x
topology: tpu7x:2x2x1
jax: 0.10.0
libtpu: 0.0.40
codegen_flags: <defaults>
</compile_context>

<pallas_src>
import functools

import jax
import jax.numpy as jnp
import numpy as np
from jax.experimental import pallas as pl
from jax.experimental.pallas import tpu as pltpu

# ----- model hyper-parameters (namedict equivalents) -----
Z_DIM = 8
H_DIM = 32
OUT_DIM = 8
LOG_VAR_INI = -1.0
LOG_VAR_MIN = -4.0

# ----- problem size for the demo -----
BATCH = 16

_HIGHEST = jax.lax.Precision.HIGHEST


# --------------------------------------------------------------------------
# Parameter packing: one (total, 1) f32 column, each segment 8-sublane aligned.
# --------------------------------------------------------------------------
def _param_offsets(h_dim, out_dim):
    def up8(n):
        return -(-n // 8) * 8

    o_b1 = 0
    o_b2 = o_b1 + up8(h_dim)
    o_b3 = o_b2 + up8(h_dim)
    o_std = o_b3 + up8(out_dim)
    o_inv = o_std + up8(out_dim)
    total = o_inv + up8(out_dim)
    return (o_b1, o_b2, o_b3, o_std, o_inv), total


def _pack_param_col(b1, b2, b3, log_var, log_var_min, h_dim, out_dim):
    (o_b1, o_b2, o_b3, o_std, o_inv), total = _param_offsets(h_dim, out_dim)
    lv = jnp.maximum(log_var.reshape(-1).astype(jnp.float32), log_var_min)
    std = jnp.exp(0.5 * lv)
    inv_std = 1.0 / std
    col = jnp.zeros((total,), jnp.float32)
    col = col.at[o_b1:o_b1 + h_dim].set(b1.reshape(-1).astype(jnp.float32))
    col = col.at[o_b2:o_b2 + h_dim].set(b2.reshape(-1).astype(jnp.float32))
    col = col.at[o_b3:o_b3 + out_dim].set(b3.reshape(-1).astype(jnp.float32))
    col = col.at[o_std:o_std + out_dim].set(std)
    col = col.at[o_inv:o_inv + out_dim].set(inv_std)
    return col.reshape(total, 1)


# --------------------------------------------------------------------------
# Kernel: everything in the transposed (feature, batch) layout.
# --------------------------------------------------------------------------
def siminet_kernel(zt_ref, w1t_ref, w2t_ref, w3t_ref, prm_ref, epst_ref,
                   xt_ref, negt_ref, *, h_dim, out_dim, offs):
    o_b1, o_b2, o_b3, o_std, o_inv = offs

    # Sublane-aligned (row) slices of the packed parameter column — free.
    b1 = prm_ref[o_b1:o_b1 + h_dim, :]        # (h_dim, 1)
    b2 = prm_ref[o_b2:o_b2 + h_dim, :]        # (h_dim, 1)
    b3 = prm_ref[o_b3:o_b3 + out_dim, :]      # (out_dim, 1)
    std = prm_ref[o_std:o_std + out_dim, :]   # (out_dim, 1)
    inv_std = prm_ref[o_inv:o_inv + out_dim, :]

    zt = zt_ref[...]                          # (z_dim, tile_b) f32, batch on lanes

    # f32 MXU matmuls, MXU N = tile_b (lane-dense).
    h1 = jnp.dot(w1t_ref[...], zt,
                 preferred_element_type=jnp.float32, precision=_HIGHEST) + b1
    h1 = jnp.maximum(h1, 0.0)
    h2 = jnp.dot(w2t_ref[...], h1,
                 preferred_element_type=jnp.float32, precision=_HIGHEST) + b2
    h2 = jnp.maximum(h2, 0.0)
    mu = jnp.dot(w3t_ref[...], h2,
                 preferred_element_type=jnp.float32, precision=_HIGHEST) + b3

    eps = epst_ref[...]                       # (out_dim, tile_b) f32

    # Two lane-dense, unmasked stores (no concat / lane roll).
    xt_ref[...] = (mu + std * eps).astype(xt_ref.dtype)
    negt_ref[...] = (eps * inv_std).astype(negt_ref.dtype)


# --------------------------------------------------------------------------
# Tile picking (lane axis = batch): byte-capped, >=2 tiles when B is large
# so the "parallel" grid axis can shard across v7x's two TensorCores.
# --------------------------------------------------------------------------
def _pick_tile_b(B, *, z_dim, out_dim, lane=128, tile_byte_budget=8 << 20):
    if B <= 2 * lane:
        return B  # single full-extent tile (BlockSpec full-dim rule applies)
    # double-buffered f32 blocks per column: z + eps + X + neg_score
    bytes_per_col = 4 * (z_dim + 3 * out_dim) * 2
    cap_bytes = tile_byte_budget // bytes_per_col
    cap_cores = (B + 1) // 2               # at least 2 grid steps
    tile = max(lane, min(cap_bytes, cap_cores))
    return (tile // lane) * lane


# --------------------------------------------------------------------------
# Wrapper (jitted): layout plumbing + pallas_call.
# --------------------------------------------------------------------------
@jax.jit
def siminet_forward(Z, params, eps_t, log_var_min=LOG_VAR_MIN):
    w1, b1, w2, b2, w3, b3, log_var = params
    B, z_dim = Z.shape
    h_dim = w1.shape[1]
    out_dim = w3.shape[1]

    tile_b = _pick_tile_b(B, z_dim=z_dim, out_dim=out_dim)
    grid = (pl.cdiv(B, tile_b),)

    # Transposed (feature, batch) operands — batch maps to lanes.
    zt = Z.astype(jnp.float32).T                     # (z_dim, B)
    w1t = w1.astype(jnp.float32).T                   # (h_dim, z_dim)
    w2t = w2.astype(jnp.float32).T                   # (h_dim, h_dim)
    w3t = w3.astype(jnp.float32).T                   # (out_dim, h_dim)
    prm = _pack_param_col(b1, b2, b3, log_var, log_var_min, h_dim, out_dim)
    epst = eps_t.astype(jnp.float32)                 # (out_dim, B)

    offs, total = _param_offsets(h_dim, out_dim)
    kernel = functools.partial(siminet_kernel, h_dim=h_dim, out_dim=out_dim,
                               offs=offs)

    batch_spec = lambda rows: pl.BlockSpec((rows, tile_b), lambda i: (0, i))
    full_spec = lambda r, c: pl.BlockSpec((r, c), lambda i: (0, 0))

    xt, negt = pl.pallas_call(
        kernel,
        out_shape=(jax.ShapeDtypeStruct((out_dim, B), jnp.float32),
                   jax.ShapeDtypeStruct((out_dim, B), jnp.float32)),
        grid_spec=pltpu.PrefetchScalarGridSpec(
            num_scalar_prefetch=0,
            grid=grid,
            in_specs=[
                batch_spec(z_dim),                 # Zᵀ
                full_spec(h_dim, z_dim),           # w1ᵀ
                full_spec(h_dim, h_dim),           # w2ᵀ
                full_spec(out_dim, h_dim),         # w3ᵀ
                full_spec(total, 1),               # [b1|b2|b3|std|inv_std] column
                batch_spec(out_dim),               # epsᵀ
            ],
            out_specs=(batch_spec(out_dim),        # Xᵀ
                       batch_spec(out_dim)),       # neg_score_implicitᵀ
        ),
        compiler_params=pltpu.CompilerParams(
            dimension_semantics=("parallel",),
            vmem_limit_bytes=32 * 1024 * 1024),
    )(zt, w1t, w2t, w3t, prm, epst)

    # Back to the module's (B, out_dim) interface.
    return xt.T, negt.T


# --------------------------------------------------------------------------
# Deterministic synthetic parameters (shapes from SIMINet.__init__).
# --------------------------------------------------------------------------
def init_params(key):
    k1, k2, k3, k4, k5, k6 = jax.random.split(key, 6)
    w1 = jax.random.normal(k1, (Z_DIM, H_DIM), jnp.float32) / np.sqrt(Z_DIM)
    b1 = jax.random.normal(k2, (1, H_DIM), jnp.float32) * 0.01
    w2 = jax.random.normal(k3, (H_DIM, H_DIM), jnp.float32) / np.sqrt(H_DIM)
    b2 = jax.random.normal(k4, (1, H_DIM), jnp.float32) * 0.01
    w3 = jax.random.normal(k5, (H_DIM, OUT_DIM), jnp.float32) / np.sqrt(H_DIM)
    b3 = jax.random.normal(k6, (1, OUT_DIM), jnp.float32) * 0.01
    log_var = jnp.zeros((1, OUT_DIM), jnp.float32) + LOG_VAR_INI
    return (w1, b1, w2, b2, w3, b3, log_var)


# --------------------------------------------------------------------------
# True f32 module semantics (reference), eps passed explicitly.
# --------------------------------------------------------------------------
def siminet_reference(Z, params, eps, *, log_var_min=LOG_VAR_MIN):
    w1, b1, w2, b2, w3, b3, log_var = params
    h1 = jnp.maximum(jnp.dot(Z, w1, precision=_HIGHEST) + b1, 0.0)
    h2 = jnp.maximum(jnp.dot(h1, w2, precision=_HIGHEST) + b2, 0.0)
    mu = jnp.dot(h2, w3, precision=_HIGHEST) + b3
    lv = jnp.maximum(log_var, log_var_min)
    std = jnp.exp(lv / 2.0)
    return mu + std * eps, eps / std


if __name__ == "__main__":
    key = jax.random.PRNGKey(0)
    kp, kz, ke = jax.random.split(key, 3)

    params = init_params(kp)
    Z = jax.random.normal(kz, (BATCH, Z_DIM), jnp.float32)
    # eps ~ N(0,1), generated directly in transposed (out_dim, B) layout.
    eps_t = jax.random.normal(ke, (OUT_DIM, BATCH), jnp.float32)

    X, neg_score = siminet_forward(Z, params, eps_t)
    X = jax.block_until_ready(X)
    neg_score = jax.block_until_ready(neg_score)

    X_ref, neg_ref = siminet_reference(Z, params, eps_t.T)
    np.testing.assert_allclose(np.asarray(X), np.asarray(X_ref),
                               rtol=1e-4, atol=1e-4)
    np.testing.assert_allclose(np.asarray(neg_score), np.asarray(neg_ref),
                               rtol=1e-4, atol=1e-4)

    print("KERNEL_OK")
</pallas_src>

<mosaic_0001>
module attributes {stable_mosaic.version = 11 : i64} {
  func.func @siminet_kernel(%arg0: i32, %arg1: memref<8x16xf32, #tpu.memory_space<vmem>>, %arg2: memref<32x8xf32, #tpu.memory_space<vmem>>, %arg3: memref<32x32xf32, #tpu.memory_space<vmem>>, %arg4: memref<8x32xf32, #tpu.memory_space<vmem>>, %arg5: memref<88x1xf32, #tpu.memory_space<vmem>>, %arg6: memref<8x16xf32, #tpu.memory_space<vmem>>, %arg7: memref<8x16xf32, #tpu.memory_space<vmem>>, %arg8: memref<8x16xf32, #tpu.memory_space<vmem>>) attributes {dimension_semantics = [#tpu.dimension_semantics<parallel>], iteration_bounds = array<i64: 1>, scalar_prefetch = 0 : i64, scratch_operands = 0 : i64, tpu.core_type = #tpu.core_type<tc>, window_params = [{transform_indices = @transform_0, window_bounds = array<i64: 8, 16>}, {pipeline_mode = #tpu.pipeline_mode<synchronous>, transform_indices = @transform_1, window_bounds = array<i64: 32, 8>}, {pipeline_mode = #tpu.pipeline_mode<synchronous>, transform_indices = @transform_2, window_bounds = array<i64: 32, 32>}, {pipeline_mode = #tpu.pipeline_mode<synchronous>, transform_indices = @transform_3, window_bounds = array<i64: 8, 32>}, {pipeline_mode = #tpu.pipeline_mode<synchronous>, transform_indices = @transform_4, window_bounds = array<i64: 88, 1>}, {transform_indices = @transform_5, window_bounds = array<i64: 8, 16>}, {transform_indices = @transform_6, window_bounds = array<i64: 8, 16>}, {transform_indices = @transform_7, window_bounds = array<i64: 8, 16>}]} {
    %c0 = arith.constant 0 : index
    %c0_0 = arith.constant 0 : index
    %0 = vector.load %arg5[%c0, %c0_0] : memref<88x1xf32, #tpu.memory_space<vmem>>, vector<32x1xf32>
    %c32 = arith.constant 32 : index
    %c0_1 = arith.constant 0 : index
    %1 = vector.load %arg5[%c32, %c0_1] : memref<88x1xf32, #tpu.memory_space<vmem>>, vector<32x1xf32>
    %c64 = arith.constant 64 : index
    %c0_2 = arith.constant 0 : index
    %2 = vector.load %arg5[%c64, %c0_2] : memref<88x1xf32, #tpu.memory_space<vmem>>, vector<8x1xf32>
    %c72 = arith.constant 72 : index
    %c0_3 = arith.constant 0 : index
    %3 = vector.load %arg5[%c72, %c0_3] : memref<88x1xf32, #tpu.memory_space<vmem>>, vector<8x1xf32>
    %c80 = arith.constant 80 : index
    %c0_4 = arith.constant 0 : index
    %4 = vector.load %arg5[%c80, %c0_4] : memref<88x1xf32, #tpu.memory_space<vmem>>, vector<8x1xf32>
    %c0_5 = arith.constant 0 : index
    %c0_6 = arith.constant 0 : index
    %5 = vector.load %arg1[%c0_5, %c0_6] : memref<8x16xf32, #tpu.memory_space<vmem>>, vector<8x16xf32>
    %c0_7 = arith.constant 0 : index
    %c0_8 = arith.constant 0 : index
    %6 = vector.load %arg2[%c0_7, %c0_8] : memref<32x8xf32, #tpu.memory_space<vmem>>, vector<32x8xf32>
    %cst = arith.constant dense<0.000000e+00> : vector<32x16xf32>
    %7 = tpu.matmul %6, %5, %cst {dimension_numbers = #tpu.dot_dimension_numbers<[1], [0], [0], [1], [0, 0, 1, 1], [], []>, precision = #tpu.contract_precision<fp32>} : vector<32x8xf32>, vector<8x16xf32>, vector<32x16xf32> -> vector<32x16xf32>
    %8 = vector.broadcast %0 : vector<32x1xf32> to vector<32x16xf32>
    %9 = arith.addf %7, %8 : vector<32x16xf32>
    %cst_9 = arith.constant 0.000000e+00 : f32
    %10 = vector.broadcast %cst_9 : f32 to vector<32x16xf32>
    %11 = arith.maximumf %9, %10 : vector<32x16xf32>
    %c0_10 = arith.constant 0 : index
    %c0_11 = arith.constant 0 : index
    %12 = vector.load %arg3[%c0_10, %c0_11] : memref<32x32xf32, #tpu.memory_space<vmem>>, vector<32x32xf32>
    %cst_12 = arith.constant dense<0.000000e+00> : vector<32x16xf32>
    %13 = tpu.matmul %12, %11, %cst_12 {dimension_numbers = #tpu.dot_dimension_numbers<[1], [0], [0], [1], [0, 0, 1, 1], [], []>, precision = #tpu.contract_precision<fp32>} : vector<32x32xf32>, vector<32x16xf32>, vector<32x16xf32> -> vector<32x16xf32>
    %14 = vector.broadcast %1 : vector<32x1xf32> to vector<32x16xf32>
    %15 = arith.addf %13, %14 : vector<32x16xf32>
    %cst_13 = arith.constant 0.000000e+00 : f32
    %16 = vector.broadcast %cst_13 : f32 to vector<32x16xf32>
    %17 = arith.maximumf %15, %16 : vector<32x16xf32>
    %c0_14 = arith.constant 0 : index
    %c0_15 = arith.constant 0 : index
    %18 = vector.load %arg4[%c0_14, %c0_15] : memref<8x32xf32, #tpu.memory_space<vmem>>, vector<8x32xf32>
    %cst_16 = arith.constant dense<0.000000e+00> : vector<8x16xf32>
    %19 = tpu.matmul %18, %17, %cst_16 {dimension_numbers = #tpu.dot_dimension_numbers<[1], [0], [0], [1], [0, 0, 1, 1], [], []>, precision = #tpu.contract_precision<fp32>} : vector<8x32xf32>, vector<32x16xf32>, vector<8x16xf32> -> vector<8x16xf32>
    %20 = vector.broadcast %2 : vector<8x1xf32> to vector<8x16xf32>
    %21 = arith.addf %19, %20 : vector<8x16xf32>
    %c0_17 = arith.constant 0 : index
    %c0_18 = arith.constant 0 : index
    %22 = vector.load %arg6[%c0_17, %c0_18] : memref<8x16xf32, #tpu.memory_space<vmem>>, vector<8x16xf32>
    %23 = vector.broadcast %3 : vector<8x1xf32> to vector<8x16xf32>
    %24 = arith.mulf %23, %22 : vector<8x16xf32>
    %25 = arith.addf %21, %24 : vector<8x16xf32>
    %c0_19 = arith.constant 0 : index
    %c0_20 = arith.constant 0 : index
    %26 = vector.load %arg7[%c0_19, %c0_20] : memref<8x16xf32, #tpu.memory_space<vmem>>, vector<8x16xf32>
    tpu.vector_store %arg7[%c0_19, %c0_20], %25 {strides = array<i32>} : memref<8x16xf32, #tpu.memory_space<vmem>>, vector<8x16xf32>,
    %27 = vector.broadcast %4 : vector<8x1xf32> to vector<8x16xf32>
    %28 = arith.mulf %22, %27 : vector<8x16xf32>
    %c0_21 = arith.constant 0 : index
    %c0_22 = arith.constant 0 : index
    %29 = vector.load %arg8[%c0_21, %c0_22] : memref<8x16xf32, #tpu.memory_space<vmem>>, vector<8x16xf32>
    tpu.vector_store %arg8[%c0_21, %c0_22], %28 {strides = array<i32>} : memref<8x16xf32, #tpu.memory_space<vmem>>, vector<8x16xf32>,
    return
  }
  func.func @transform_0(%arg0: i32) -> (i32, i32) {
    %c0_i32 = arith.constant 0 : i32
    %c0_i32_0 = arith.constant 0 : i32
    return %c0_i32, %arg0 : i32, i32
  }
  func.func @transform_1(%arg0: i32) -> (i32, i32) {
    %c0_i32 = arith.constant 0 : i32
    %c0_i32_0 = arith.constant 0 : i32
    %c0_i32_1 = arith.constant 0 : i32
    return %c0_i32, %c0_i32_0 : i32, i32
  }
  func.func @transform_2(%arg0: i32) -> (i32, i32) {
    %c0_i32 = arith.constant 0 : i32
    %c0_i32_0 = arith.constant 0 : i32
    %c0_i32_1 = arith.constant 0 : i32
    return %c0_i32, %c0_i32_0 : i32, i32
  }
  func.func @transform_3(%arg0: i32) -> (i32, i32) {
    %c0_i32 = arith.constant 0 : i32
    %c0_i32_0 = arith.constant 0 : i32
    %c0_i32_1 = arith.constant 0 : i32
    return %c0_i32, %c0_i32_0 : i32, i32
  }
  func.func @transform_4(%arg0: i32) -> (i32, i32) {
    %c0_i32 = arith.constant 0 : i32
    %c0_i32_0 = arith.constant 0 : i32
    %c0_i32_1 = arith.constant 0 : i32
    return %c0_i32, %c0_i32_0 : i32, i32
  }
  func.func @transform_5(%arg0: i32) -> (i32, i32) {
    %c0_i32 = arith.constant 0 : i32
    %c0_i32_0 = arith.constant 0 : i32
    return %c0_i32, %arg0 : i32, i32
  }
  func.func @transform_6(%arg0: i32) -> (i32, i32) {
    %c0_i32 = arith.constant 0 : i32
    %c0_i32_0 = arith.constant 0 : i32
    return %c0_i32, %arg0 : i32, i32
  }
  func.func @transform_7(%arg0: i32) -> (i32, i32) {
    %c0_i32 = arith.constant 0 : i32
    %c0_i32_0 = arith.constant 0 : i32
    return %c0_i32, %arg0 : i32, i32
  }
}

</mosaic_0001>

<llo_original>
// kernel: siminet_forward.1
$region0: #{siminet_forward.1}
  #allocation0 [shape = 'u32[]', space=smem, size = 0x4, offset = 0x4, fixed_abs, tag = 'smem constant byte address 0x4 - core index']
  #allocation1 [shape = 'u32[144,128]{1,0:T(1,128)}', space=vmem, size = 0x12000, scoped, tag = 'internal scratch']
  %s0 = inlined_call_operand.vmem [shape: f32[8,16], index: 0, kind: input, shape index: {}]
  %s1 = inlined_call_operand.vmem [shape: f32[32,8], index: 1, kind: input, shape index: {}]
  %s2 = inlined_call_operand.vmem [shape: f32[32,32], index: 2, kind: input, shape index: {}]
  %s3 = inlined_call_operand.vmem [shape: f32[8,32], index: 3, kind: input, shape index: {}]
  %s4 = inlined_call_operand.vmem [shape: f32[88,1], index: 4, kind: input, shape index: {}]
  %s5 = inlined_call_operand.vmem [shape: f32[8,16], index: 5, kind: input, shape index: {}]
  %s6 = inlined_call_operand.hbm [shape: f32[8,16], index: 6, kind: output, shape index: {0}]
  %s7 = inlined_call_operand.hbm [shape: f32[8,16], index: 7, kind: output, shape index: {1}]
  %8 = xla_tuple %s6, %s7
  %s9 = sld [smem:[#allocation0]]
  $region42: #{siminet_forward.1} parent=0
    _
  %s11 = ssub.s32 1, %s9
  %s12 = scalar_select 0, %s11, %s9
  $region1: #{siminet_forward.1} parent=0
    #allocation2 [shape = 'u8[4096]{0}', space=vmem, size = 0x1000, scoped, tag = 'output window, operand 0, single buffered']
    #allocation3 [shape = 's32[1]{0}', space=sflag, size = 0x4, scoped, tag = 'scoped memory for siminet_forward.1']
    #allocation4 [shape = 'u8[4096]{0}', space=vmem, size = 0x1000, scoped, tag = 'output window, operand 1, single buffered']
    #allocation5 [shape = 's32[1]{0}', space=sflag, size = 0x4, scoped, tag = 'scoped memory for siminet_forward.1']
    %13 = vsyncpa [#allocation3], 0
    %14 = vsyncpa [#allocation5], 0
    // Predicated region
    $region2: #{siminet_forward.1} parent=1 // pred_check
      _
    $region3: #{siminet_forward.1} parent=1 // pred_check_branch
      %16 = sbr.rel (0) target = $region5
    $region4: #{siminet_forward.1} parent=1 // pred_region
      _
    $region5: #{siminet_forward.1} parent=1 // pred_fallthru
      _
    // Predicated region
    $region6: #{siminet_forward.1} parent=1 // pred_check
      _
    $region7: #{siminet_forward.1} parent=1 // pred_check_branch
      %18 = sbr.rel (0) target = $region9
    $region8: #{siminet_forward.1} parent=1 // pred_region
      _
    $region9: #{siminet_forward.1} parent=1 // pred_fallthru
      _
    // Predicated region
    $region10: #{siminet_forward.1} parent=1 // pred_check
      _
    $region11: #{siminet_forward.1} parent=1 // pred_check_branch
      %20 = sbr.rel (0) target = $region13
    $region12: #{siminet_forward.1} parent=1 // pred_region
      _
    $region13: #{siminet_forward.1} parent=1 // pred_fallthru
      _
    // Predicated region
    $region14: #{siminet_forward.1} parent=1 // pred_check
      _
    $region15: #{siminet_forward.1} parent=1 // pred_check_branch
      %22 = sbr.rel (0) target = $region17
    $region16: #{siminet_forward.1} parent=1 // pred_region
      _
    $region17: #{siminet_forward.1} parent=1 // pred_fallthru
      _
    // Predicated region
    $region18: #{siminet_forward.1} parent=1 // pred_check
      _
    $region19: #{siminet_forward.1} parent=1 // pred_check_branch
      %24 = sbr.rel (0) target = $region21
    $region20: #{siminet_forward.1} parent=1 // pred_region
      _
    $region21: #{siminet_forward.1} parent=1 // pred_fallthru
      _
    // Predicated region
    $region22: #{siminet_forward.1} parent=1 // pred_check
      _
    $region23: #{siminet_forward.1} parent=1 // pred_check_branch
      %26 = sbr.rel (0) target = $region25
    $region24: #{siminet_forward.1} parent=1 // pred_region
      _
    $region25: #{siminet_forward.1} parent=1 // pred_fallthru
      _
    %v27 = vld [vmem:[%s4] sm:$0xff]
    %v28 = vld [vmem:[%s4 + $0x8] sm:$0xff]
    %v29 = vld [vmem:[%s4 + $0x10] sm:$0xff]
    %v30 = vld [vmem:[%s4 + $0x18] sm:$0xff]
    %v31 = vld [vmem:[%s4 + $0x20] sm:$0xff]
    %v32 = vld [vmem:[%s4 + $0x28] sm:$0xff]
    %v33 = vld [vmem:[%s4 + $0x30] sm:$0xff]
    %v34 = vld [vmem:[%s4 + $0x38] sm:$0xff]
    %v35 = vld [vmem:[%s4 + $0x40] sm:$0xff]
    %v36 = vld [vmem:[%s4 + $0x48] sm:$0xff]
    %v37 = vld [vmem:[%s4 + $0x50] sm:$0xff]
    %v38 = vld [vmem:[%s0] sm:$0xff]
    %v39 = vld [vmem:[%s1] sm:$0xff]
    %v40 = vld [vmem:[%s1 + $0x8] sm:$0xff]
    %v41 = vld [vmem:[%s1 + $0x10] sm:$0xff]
    %v42 = vld [vmem:[%s1 + $0x18] sm:$0xff]
    %44 = vset.pattern.permute.xlu0 0
    %45 = vperm.xlu0 %44, %v27
    %v46 = vpop.permute.xlu0 %45
    %49 = vset.pattern.permute.xlu0 0
    %50 = vperm.xlu0 %49, %v28
    %v51 = vpop.permute.xlu0 %50
    %54 = vset.pattern.permute.xlu0 0
    %55 = vperm.xlu0 %54, %v29
    %v56 = vpop.permute.xlu0 %55
    %59 = vset.pattern.permute.xlu0 0
    %60 = vperm.xlu0 %59, %v30
    %v61 = vpop.permute.xlu0 %60
    %vm63 = vcmask 64512
    %v65 = vsel %vm63, %v39, 0
    %v68 = vsel %vm63, %v40, 0
    %v71 = vsel %vm63, %v41, 0
    %v74 = vsel %vm63, %v42, 0
    %76 = vmatprep.subr.mxu0 0.0
    %v77 = vand.u32 %v38, 4294901760
    %78 = vmatpush1.msra.mxu0 %v77
    %79 = vmatprep.subr.mxu0 0.0
    %80 = vmatpush1.msra.mxu0 0.0
    %81 = vmatprep.subr.mxu0 0.0
    %82 = vmatpush1.msra.mxu0 0.0
    %83 = vmatprep.subr.mxu0 0.0
    %84 = vmatpush1.msra.mxu0 0.0
    %85 = vmatprep.subr.mxu0 0.0
    %86 = vmatpush1.msra.mxu0 0.0
    %87 = vmatprep.subr.mxu0 0.0
    %88 = vmatpush1.msra.mxu0 0.0
    %89 = vmatprep.subr.mxu0 0.0
    %90 = vmatpush1.msra.mxu0 0.0
    %91 = vmatprep.subr.mxu0 0.0
    %92 = vmatpush1.msra.mxu0 0.0
    %93 = vmatprep.subr.mxu0 0.0
    %94 = vmatpush1.msra.mxu0 0.0
    %95 = vmatprep.subr.mxu0 0.0
    %96 = vmatpush1.msra.mxu0 0.0
    %97 = vmatprep.subr.mxu0 0.0
    %98 = vmatpush1.msra.mxu0 0.0
    %99 = vmatprep.subr.mxu0 0.0
    %100 = vmatpush1.msra.mxu0 0.0
    %101 = vmatprep.subr.mxu0 0.0
    %102 = vmatpush1.msra.mxu0 0.0
    %103 = vmatprep.subr.mxu0 0.0
    %104 = vmatpush1.msra.mxu0 0.0
    %105 = vmatprep.subr.mxu0 0.0
    %106 = vmatpush1.msra.mxu0 0.0
    %107 = vmatprep.subr.mxu0 0.0
    %108 = vmatpush1.msra.mxu0 0.0
    %109 = vmatprep.subr.mxu0 0.0
    %110 = vmatpush1.msra.mxu0 0.0
    %111 = vmatprep.subr.mxu0 0.0
    %112 = vmatpush1.msra.mxu0 0.0
    %113 = vmatprep.subr.mxu0 0.0
    %114 = vmatpush1.msra.mxu0 0.0
    %115 = vmatprep.subr.mxu0 0.0
    %116 = vmatpush1.msra.mxu0 0.0
    %117 = vmatprep.subr.mxu0 0.0
    %118 = vmatpush1.msra.mxu0 0.0
    %119 = vmatprep.subr.mxu0 0.0
    %120 = vmatpush1.msra.mxu0 0.0
    %121 = vmatprep.subr.mxu0 0.0
    %122 = vmatpush1.msra.mxu0 0.0
    %123 = vmatprep.subr.mxu0 0.0
    %124 = vmatpush1.msra.mxu0 0.0
    %125 = vmatprep.subr.mxu0 0.0
    %126 = vmatpush1.msra.mxu0 0.0
    %127 = vmatprep.subr.mxu0 0.0
    %128 = vmatpush1.msra.mxu0 0.0
    %129 = vmatprep.subr.mxu0 0.0
    %130 = vmatpush1.msra.mxu0 0.0
    %131 = vmatprep.subr.mxu0 0.0
    %132 = vmatpush1.msra.mxu0 0.0
    %133 = vmatprep.subr.mxu0 0.0
    %134 = vmatpush1.msra.mxu0 0.0
    %135 = vmatprep.subr.mxu0 0.0
    %136 = vmatpush1.msra.mxu0 0.0
    %137 = vmatprep.subr.mxu0 0.0
    %138 = vmatpush1.msra.mxu0 0.0
    %139 = vmatprep.subr.mxu0 0.0
    %140 = vmatpush1.msra.mxu0 0.0
    %141 = vmatprep.mubr.f32.mxu0 0.0
    %v142 = vand.u32 %v65, 4294901760
    %v143 = vsub.f32 %v65, %v142
    %v144 = vand.u32 %v143, 4294901760
    %v145 = vsub.f32 %v143, %v144
    %v146 = vand.u32 %v145, 4294901760
    %147 = vmatmul.mubr.f32.gmra.mrb[0].mxu0 %v146
    %v148 = vpop.f32.mrb[0].mxu0
    %v149 = vadd.f32 %v46, %v148
    %v150 = vpop.f32.mrb[0].mxu0
    %151 = vmatprep.mubr.f32.mxu0 0.0
    %v152 = vand.u32 %v68, 4294901760
    %v153 = vsub.f32 %v68, %v152
    %v154 = vand.u32 %v153, 4294901760
    %v155 = vsub.f32 %v153, %v154
    %v156 = vand.u32 %v155, 4294901760
    %157 = vmatmul.mubr.f32.gmra.mrb[0].mxu0 %v156
    %v158 = vpop.f32.mrb[0].mxu0
    %v159 = vadd.f32 %v51, %v158
    %v160 = vpop.f32.mrb[0].mxu0
    %161 = vmatprep.mubr.f32.mxu0 0.0
    %v162 = vand.u32 %v71, 4294901760
    %v163 = vsub.f32 %v71, %v162
    %v164 = vand.u32 %v163, 4294901760
    %v165 = vsub.f32 %v163, %v164
    %v166 = vand.u32 %v165, 4294901760
    %167 = vmatmul.mubr.f32.gmra.mrb[0].mxu0 %v166
    %v168 = vpop.f32.mrb[0].mxu0
    %v169 = vadd.f32 %v56, %v168
    %v170 = vpop.f32.mrb[0].mxu0
    %171 = vmatprep.mubr.f32.mxu0 0.0
    %v172 = vand.u32 %v74, 4294901760
    %v173 = vsub.f32 %v74, %v172
    %v174 = vand.u32 %v173, 4294901760
    %v175 = vsub.f32 %v173, %v174
    %v176 = vand.u32 %v175, 4294901760
    %177 = vmatmul.mubr.f32.gmra.mrb[0].mxu0 %v176
    %v178 = vpop.f32.mrb[0].mxu0
    %v179 = vadd.f32 %v61, %v178
    %v180 = vpop.f32.mrb[0].mxu0
    %181 = vdwg.mxu0
    %182 = vmatprep.subr.mxu0 0.0
    %v183 = vand.u32 %v38, 4294901760
    %v184 = vsub.f32 %v38, %v183
    %v185 = vand.u32 %v184, 4294901760
    %v186 = vsub.f32 %v184, %v185
    %v187 = vand.u32 %v186, 4294901760
    %188 = vmatpush1.msra.mxu0 %v187
    %189 = vmatprep.subr.mxu0 0.0
    %190 = vmatpush1.msra.mxu0 0.0
    %191 = vmatprep.subr.mxu0 0.0
    %192 = vmatpush1.msra.mxu0 0.0
    %193 = vmatprep.subr.mxu0 0.0
    %194 = vmatpush1.msra.mxu0 0.0
    %195 = vmatprep.subr.mxu0 0.0
    %196 = vmatpush1.msra.mxu0 0.0
    %197 = vmatprep.subr.mxu0 0.0
    %198 = vmatpush1.msra.mxu0 0.0
    %199 = vmatprep.subr.mxu0 0.0
    %200 = vmatpush1.msra.mxu0 0.0
    %201 = vmatprep.subr.mxu0 0.0
    %202 = vmatpush1.msra.mxu0 0.0
    %203 = vmatprep.subr.mxu0 0.0
    %204 = vmatpush1.msra.mxu0 0.0
    %205 = vmatprep.subr.mxu0 0.0
    %206 = vmatpush1.msra.mxu0 0.0
    %207 = vmatprep.subr.mxu0 0.0
    %208 = vmatpush1.msra.mxu0 0.0
    %209 = vmatprep.subr.mxu0 0.0
    %210 = vmatpush1.msra.mxu0 0.0
    %211 = vmatprep.subr.mxu0 0.0
    %212 = vmatpush1.msra.mxu0 0.0
    %213 = vmatprep.subr.mxu0 0.0
    %214 = vmatpush1.msra.mxu0 0.0
    %215 = vmatprep.subr.mxu0 0.0
    %216 = vmatpush1.msra.mxu0 0.0
    %217 = vmatprep.subr.mxu0 0.0
    %218 = vmatpush1.msra.mxu0 0.0
    %219 = vmatprep.subr.mxu0 0.0
    %220 = vmatpush1.msra.mxu0 0.0
    %221 = vmatprep.subr.mxu0 0.0
    %222 = vmatpush1.msra.mxu0 0.0
    %223 = vmatprep.subr.mxu0 0.0
    %224 = vmatpush1.msra.mxu0 0.0
    %225 = vmatprep.subr.mxu0 0.0
    %226 = vmatpush1.msra.mxu0 0.0
    %227 = vmatprep.subr.mxu0 0.0
    %228 = vmatpush1.msra.mxu0 0.0
    %229 = vmatprep.subr.mxu0 0.0
    %230 = vmatpush1.msra.mxu0 0.0
    %231 = vmatprep.subr.mxu0 0.0
    %232 = vmatpush1.msra.mxu0 0.0
    %233 = vmatprep.subr.mxu0 0.0
    %234 = vmatpush1.msra.mxu0 0.0
    %235 = vmatprep.subr.mxu0 0.0
    %236 = vmatpush1.msra.mxu0 0.0
    %237 = vmatprep.subr.mxu0 0.0
    %238 = vmatpush1.msra.mxu0 0.0
    %239 = vmatprep.subr.mxu0 0.0
    %240 = vmatpush1.msra.mxu0 0.0
    %241 = vmatprep.subr.mxu0 0.0
    %242 = vmatpush1.msra.mxu0 0.0
    %243 = vmatprep.subr.mxu0 0.0
    %244 = vmatpush1.msra.mxu0 0.0
    %245 = vmatprep.subr.mxu0 0.0
    %246 = vmatpush1.msra.mxu0 0.0
    %247 = vmatprep.subr.mxu0 0.0
    %248 = vmatpush1.msra.mxu0 0.0
    %249 = vmatprep.subr.mxu0 0.0
    %250 = vmatpush1.msra.mxu0 0.0
    %251 = vmatprep.mubr.f32.mxu0 0.0
    %v252 = vand.u32 %v65, 4294901760
    %253 = vmatmul.mubr.f32.gmra.mrb[0].mxu0 %v252
    %v254 = vpop.f32.mrb[0].mxu0
    %v255 = vadd.f32 %v149, %v254
    %v256 = vpop.f32.mrb[0].mxu0
    %257 = vmatprep.mubr.f32.mxu0 0.0
    %v258 = vand.u32 %v68, 4294901760
    %259 = vmatmul.mubr.f32.gmra.mrb[0].mxu0 %v258
    %v260 = vpop.f32.mrb[0].mxu0
    %v261 = vadd.f32 %v159, %v260
    %v262 = vpop.f32.mrb[0].mxu0
    %263 = vmatprep.mubr.f32.mxu0 0.0
    %v264 = vand.u32 %v71, 4294901760
    %265 = vmatmul.mubr.f32.gmra.mrb[0].mxu0 %v264
    %v266 = vpop.f32.mrb[0].mxu0
    %v267 = vadd.f32 %v169, %v266
    %v268 = vpop.f32.mrb[0].mxu0
    %269 = vmatprep.mubr.f32.mxu0 0.0
    %v270 = vand.u32 %v74, 4294901760
    %271 = vmatmul.mubr.f32.gmra.mrb[0].mxu0 %v270
    %v272 = vpop.f32.mrb[0].mxu0
    %v273 = vadd.f32 %v179, %v272
    %v274 = vpop.f32.mrb[0].mxu0
    %275 = vdwg.mxu0
    %276 = vmatprep.subr.mxu0 0.0
    %v277 = vand.u32 %v38, 4294901760
    %v278 = vsub.f32 %v38, %v277
    %279 = vmatpush1.msra.mxu0 %v278
    %280 = vmatprep.subr.mxu0 0.0
    %281 = vmatpush1.msra.mxu0 0.0
    %282 = vmatprep.subr.mxu0 0.0
    %283 = vmatpush1.msra.mxu0 0.0
    %284 = vmatprep.subr.mxu0 0.0
    %285 = vmatpush1.msra.mxu0 0.0
    %286 = vmatprep.subr.mxu0 0.0
    %287 = vmatpush1.msra.mxu0 0.0
    %288 = vmatprep.subr.mxu0 0.0
    %289 = vmatpush1.msra.mxu0 0.0
    %290 = vmatprep.subr.mxu0 0.0
    %291 = vmatpush1.msra.mxu0 0.0
    %292 = vmatprep.subr.mxu0 0.0
    %293 = vmatpush1.msra.mxu0 0.0
    %294 = vmatprep.subr.mxu0 0.0
    %295 = vmatpush1.msra.mxu0 0.0
    %296 = vmatprep.subr.mxu0 0.0
    %297 = vmatpush1.msra.mxu0 0.0
    %298 = vmatprep.subr.mxu0 0.0
    %299 = vmatpush1.msra.mxu0 0.0
    %300 = vmatprep.subr.mxu0 0.0
    %301 = vmatpush1.msra.mxu0 0.0
    %302 = vmatprep.subr.mxu0 0.0
    %303 = vmatpush1.msra.mxu0 0.0
    %304 = vmatprep.subr.mxu0 0.0
    %305 = vmatpush1.msra.mxu0 0.0
    %306 = vmatprep.subr.mxu0 0.0
    %307 = vmatpush1.msra.mxu0 0.0
    %308 = vmatprep.subr.mxu0 0.0
    %309 = vmatpush1.msra.mxu0 0.0
    %310 = vmatprep.subr.mxu0 0.0
    %311 = vmatpush1.msra.mxu0 0.0
    %312 = vmatprep.subr.mxu0 0.0
    %313 = vmatpush1.msra.mxu0 0.0
    %314 = vmatprep.subr.mxu0 0.0
    %315 = vmatpush1.msra.mxu0 0.0
    %316 = vmatprep.subr.mxu0 0.0
    %317 = vmatpush1.msra.mxu0 0.0
    %318 = vmatprep.subr.mxu0 0.0
    %319 = vmatpush1.msra.mxu0 0.0
    %320 = vmatprep.subr.mxu0 0.0
    %321 = vmatpush1.msra.mxu0 0.0
    %322 = vmatprep.subr.mxu0 0.0
    %323 = vmatpush1.msra.mxu0 0.0
    %324 = vmatprep.subr.mxu0 0.0
    %325 = vmatpush1.msra.mxu0 0.0
    %326 = vmatprep.subr.mxu0 0.0
    %327 = vmatpush1.msra.mxu0 0.0
    %328 = vmatprep.subr.mxu0 0.0
    %329 = vmatpush1.msra.mxu0 0.0
    %330 = vmatprep.subr.mxu0 0.0
    %331 = vmatpush1.msra.mxu0 0.0
    %332 = vmatprep.subr.mxu0 0.0
    %333 = vmatpush1.msra.mxu0 0.0
    %334 = vmatprep.subr.mxu0 0.0
    %335 = vmatpush1.msra.mxu0 0.0
    %336 = vmatprep.subr.mxu0 0.0
    %337 = vmatpush1.msra.mxu0 0.0
    %338 = vmatprep.subr.mxu0 0.0
    %339 = vmatpush1.msra.mxu0 0.0
    %340 = vmatprep.subr.mxu0 0.0
    %341 = vmatpush1.msra.mxu0 0.0
    %342 = vmatprep.mubr.f32.mxu0 0.0
    %v343 = vand.u32 %v65, 4294901760
    %v344 = vsub.f32 %v65, %v343
    %345 = vmatmul.mubr.f32.gmra.mrb[0].mxu0 %v344
    %v346 = vpop.f32.mrb[0].mxu0
    %v347 = vadd.f32 %v255, %v346
    %v348 = vpop.f32.mrb[0].mxu0
    %349 = vmatprep.mubr.f32.mxu0 0.0
    %v350 = vand.u32 %v68, 4294901760
    %v351 = vsub.f32 %v68, %v350
    %352 = vmatmul.mubr.f32.gmra.mrb[0].mxu0 %v351
    %v353 = vpop.f32.mrb[0].mxu0
    %v354 = vadd.f32 %v261, %v353
    %v355 = vpop.f32.mrb[0].mxu0
    %356 = vmatprep.mubr.f32.mxu0 0.0
    %v357 = vand.u32 %v71, 4294901760
    %v358 = vsub.f32 %v71, %v357
    %359 = vmatmul.mubr.f32.gmra.mrb[0].mxu0 %v358
    %v360 = vpop.f32.mrb[0].mxu0
    %v361 = vadd.f32 %v267, %v360
    %v362 = vpop.f32.mrb[0].mxu0
    %363 = vmatprep.mubr.f32.mxu0 0.0
    %v364 = vand.u32 %v74, 4294901760
    %v365 = vsub.f32 %v74, %v364
    %366 = vmatmul.mubr.f32.gmra.mrb[0].mxu0 %v365
    %v367 = vpop.f32.mrb[0].mxu0
    %v368 = vadd.f32 %v273, %v367
    %v369 = vpop.f32.mrb[0].mxu0
    %370 = vdwg.mxu0
    %371 = vmatprep.subr.mxu0 0.0
    %v372 = vand.u32 %v38, 4294901760
    %373 = vmatpush1.msra.mxu0 %v372
    %374 = vmatprep.subr.mxu0 0.0
    %375 = vmatpush1.msra.mxu0 0.0
    %376 = vmatprep.subr.mxu0 0.0
    %377 = vmatpush1.msra.mxu0 0.0
    %378 = vmatprep.subr.mxu0 0.0
    %379 = vmatpush1.msra.mxu0 0.0
    %380 = vmatprep.subr.mxu0 0.0
    %381 = vmatpush1.msra.mxu0 0.0
    %382 = vmatprep.subr.mxu0 0.0
    %383 = vmatpush1.msra.mxu0 0.0
    %384 = vmatprep.subr.mxu0 0.0
    %385 = vmatpush1.msra.mxu0 0.0
    %386 = vmatprep.subr.mxu0 0.0
    %387 = vmatpush1.msra.mxu0 0.0
    %388 = vmatprep.subr.mxu0 0.0
    %389 = vmatpush1.msra.mxu0 0.0
    %390 = vmatprep.subr.mxu0 0.0
    %391 = vmatpush1.msra.mxu0 0.0
    %392 = vmatprep.subr.mxu0 0.0
    %393 = vmatpush1.msra.mxu0 0.0
    %394 = vmatprep.subr.mxu0 0.0
    %395 = vmatpush1.msra.mxu0 0.0
    %396 = vmatprep.subr.mxu0 0.0
    %397 = vmatpush1.msra.mxu0 0.0
    %398 = vmatprep.subr.mxu0 0.0
    %399 = vmatpush1.msra.mxu0 0.0
    %400 = vmatprep.subr.mxu0 0.0
    %401 = vmatpush1.msra.mxu0 0.0
    %402 = vmatprep.subr.mxu0 0.0
    %403 = vmatpush1.msra.mxu0 0.0
    %404 = vmatprep.subr.mxu0 0.0
    %405 = vmatpush1.msra.mxu0 0.0
    %406 = vmatprep.subr.mxu0 0.0
    %407 = vmatpush1.msra.mxu0 0.0
    %408 = vmatprep.subr.mxu0 0.0
    %409 = vmatpush1.msra.mxu0 0.0
    %410 = vmatprep.subr.mxu0 0.0
    %411 = vmatpush1.msra.mxu0 0.0
    %412 = vmatprep.subr.mxu0 0.0
    %413 = vmatpush1.msra.mxu0 0.0
    %414 = vmatprep.subr.mxu0 0.0
    %415 = vmatpush1.msra.mxu0 0.0
    %416 = vmatprep.subr.mxu0 0.0
    %417 = vmatpush1.msra.mxu0 0.0
    %418 = vmatprep.subr.mxu0 0.0
    %419 = vmatpush1.msra.mxu0 0.0
    %420 = vmatprep.subr.mxu0 0.0
    %421 = vmatpush1.msra.mxu0 0.0
    %422 = vmatprep.subr.mxu0 0.0
    %423 = vmatpush1.msra.mxu0 0.0
    %424 = vmatprep.subr.mxu0 0.0
    %425 = vmatpush1.msra.mxu0 0.0
    %426 = vmatprep.subr.mxu0 0.0
    %427 = vmatpush1.msra.mxu0 0.0
    %428 = vmatprep.subr.mxu0 0.0
    %429 = vmatpush1.msra.mxu0 0.0
    %430 = vmatprep.subr.mxu0 0.0
    %431 = vmatpush1.msra.mxu0 0.0
    %432 = vmatprep.subr.mxu0 0.0
    %433 = vmatpush1.msra.mxu0 0.0
    %434 = vmatprep.subr.mxu0 0.0
    %435 = vmatpush1.msra.mxu0 0.0
    %436 = vmatprep.mubr.f32.mxu0 0.0
    %v437 = vand.u32 %v65, 4294901760
    %v438 = vsub.f32 %v65, %v437
    %v439 = vand.u32 %v438, 4294901760
    %440 = vmatmul.mubr.f32.gmra.mrb[0].mxu0 %v439
    %v441 = vpop.f32.mrb[0].mxu0
    %v442 = vadd.f32 %v347, %v441
    %v443 = vpop.f32.mrb[0].mxu0
    %444 = vmatprep.mubr.f32.mxu0 0.0
    %v445 = vand.u32 %v68, 4294901760
    %v446 = vsub.f32 %v68, %v445
    %v447 = vand.u32 %v446, 4294901760
    %448 = vmatmul.mubr.f32.gmra.mrb[0].mxu0 %v447
    %v449 = vpop.f32.mrb[0].mxu0
    %v450 = vadd.f32 %v354, %v449
    %v451 = vpop.f32.mrb[0].mxu0
    %452 = vmatprep.mubr.f32.mxu0 0.0
    %v453 = vand.u32 %v71, 4294901760
    %v454 = vsub.f32 %v71, %v453
    %v455 = vand.u32 %v454, 4294901760
    %456 = vmatmul.mubr.f32.gmra.mrb[0].mxu0 %v455
    %v457 = vpop.f32.mrb[0].mxu0
    %v458 = vadd.f32 %v361, %v457
    %v459 = vpop.f32.mrb[0].mxu0
    %460 = vmatprep.mubr.f32.mxu0 0.0
    %v461 = vand.u32 %v74, 4294901760
    %v462 = vsub.f32 %v74, %v461
    %v463 = vand.u32 %v462, 4294901760
    %464 = vmatmul.mubr.f32.gmra.mrb[0].mxu0 %v463
    %v465 = vpop.f32.mrb[0].mxu0
    %v466 = vadd.f32 %v368, %v465
    %v467 = vpop.f32.mrb[0].mxu0
    %468 = vdwg.mxu0
    %469 = vmatprep.subr.mxu0 0.0
    %v470 = vand.u32 %v38, 4294901760
    %v471 = vsub.f32 %v38, %v470
    %v472 = vand.u32 %v471, 4294901760
    %473 = vmatpush1.msra.mxu0 %v472
    %474 = vmatprep.subr.mxu0 0.0
    %475 = vmatpush1.msra.mxu0 0.0
    %476 = vmatprep.subr.mxu0 0.0
    %477 = vmatpush1.msra.mxu0 0.0
    %478 = vmatprep.subr.mxu0 0.0
    %479 = vmatpush1.msra.mxu0 0.0
    %480 = vmatprep.subr.mxu0 0.0
    %481 = vmatpush1.msra.mxu0 0.0
    %482 = vmatprep.subr.mxu0 0.0
    %483 = vmatpush1.msra.mxu0 0.0
    %484 = vmatprep.subr.mxu0 0.0
    %485 = vmatpush1.msra.mxu0 0.0
    %486 = vmatprep.subr.mxu0 0.0
    %487 = vmatpush1.msra.mxu0 0.0
    %488 = vmatprep.subr.mxu0 0.0
    %489 = vmatpush1.msra.mxu0 0.0
    %490 = vmatprep.subr.mxu0 0.0
    %491 = vmatpush1.msra.mxu0 0.0
    %492 = vmatprep.subr.mxu0 0.0
    %493 = vmatpush1.msra.mxu0 0.0
    %494 = vmatprep.subr.mxu0 0.0
    %495 = vmatpush1.msra.mxu0 0.0
    %496 = vmatprep.subr.mxu0 0.0
    %497 = vmatpush1.msra.mxu0 0.0
    %498 = vmatprep.subr.mxu0 0.0
    %499 = vmatpush1.msra.mxu0 0.0
    %500 = vmatprep.subr.mxu0 0.0
    %501 = vmatpush1.msra.mxu0 0.0
    %502 = vmatprep.subr.mxu0 0.0
    %503 = vmatpush1.msra.mxu0 0.0
    %504 = vmatprep.subr.mxu0 0.0
    %505 = vmatpush1.msra.mxu0 0.0
    %506 = vmatprep.subr.mxu0 0.0
    %507 = vmatpush1.msra.mxu0 0.0
    %508 = vmatprep.subr.mxu0 0.0
    %509 = vmatpush1.msra.mxu0 0.0
    %510 = vmatprep.subr.mxu0 0.0
    %511 = vmatpush1.msra.mxu0 0.0
    %512 = vmatprep.subr.mxu0 0.0
    %513 = vmatpush1.msra.mxu0 0.0
    %514 = vmatprep.subr.mxu0 0.0
    %515 = vmatpush1.msra.mxu0 0.0
    %516 = vmatprep.subr.mxu0 0.0
    %517 = vmatpush1.msra.mxu0 0.0
    %518 = vmatprep.subr.mxu0 0.0
    %519 = vmatpush1.msra.mxu0 0.0
    %520 = vmatprep.subr.mxu0 0.0
    %521 = vmatpush1.msra.mxu0 0.0
    %522 = vmatprep.subr.mxu0 0.0
    %523 = vmatpush1.msra.mxu0 0.0
    %524 = vmatprep.subr.mxu0 0.0
    %525 = vmatpush1.msra.mxu0 0.0
    %526 = vmatprep.subr.mxu0 0.0
    %527 = vmatpush1.msra.mxu0 0.0
    %528 = vmatprep.subr.mxu0 0.0
    %529 = vmatpush1.msra.mxu0 0.0
    %530 = vmatprep.subr.mxu0 0.0
    %531 = vmatpush1.msra.mxu0 0.0
    %532 = vmatprep.subr.mxu0 0.0
    %533 = vmatpush1.msra.mxu0 0.0
    %534 = vmatprep.subr.mxu0 0.0
    %535 = vmatpush1.msra.mxu0 0.0
    %536 = vmatprep.mubr.f32.mxu0 0.0
    %v537 = vand.u32 %v65, 4294901760
    %538 = vmatmul.mubr.f32.gmra.mrb[0].mxu0 %v537
    %v539 = vpop.f32.mrb[0].mxu0
    %v540 = vadd.f32 %v442, %v539
    %v541 = vpop.f32.mrb[0].mxu0
    %542 = vmatprep.mubr.f32.mxu0 0.0
    %v543 = vand.u32 %v68, 4294901760
    %544 = vmatmul.mubr.f32.gmra.mrb[0].mxu0 %v543
    %v545 = vpop.f32.mrb[0].mxu0
    %v546 = vadd.f32 %v450, %v545
    %v547 = vpop.f32.mrb[0].mxu0
    %548 = vmatprep.mubr.f32.mxu0 0.0
    %v549 = vand.u32 %v71, 4294901760
    %550 = vmatmul.mubr.f32.gmra.mrb[0].mxu0 %v549
    %v551 = vpop.f32.mrb[0].mxu0
    %v552 = vadd.f32 %v458, %v551
    %v553 = vpop.f32.mrb[0].mxu0
    %554 = vmatprep.mubr.f32.mxu0 0.0
    %v555 = vand.u32 %v74, 4294901760
    %556 = vmatmul.mubr.f32.gmra.mrb[0].mxu0 %v555
    %v557 = vpop.f32.mrb[0].mxu0
    %v558 = vadd.f32 %v466, %v557
    %v559 = vpop.f32.mrb[0].mxu0
    %560 = vdwg.mxu0
    %561 = vmatprep.subr.mxu0 0.0
    %v562 = vand.u32 %v38, 4294901760
    %563 = vmatpush1.msra.mxu0 %v562
    %564 = vmatprep.subr.mxu0 0.0
    %565 = vmatpush1.msra.mxu0 0.0
    %566 = vmatprep.subr.mxu0 0.0
    %567 = vmatpush1.msra.mxu0 0.0
    %568 = vmatprep.subr.mxu0 0.0
    %569 = vmatpush1.msra.mxu0 0.0
    %570 = vmatprep.subr.mxu0 0.0
    %571 = vmatpush1.msra.mxu0 0.0
    %572 = vmatprep.subr.mxu0 0.0
    %573 = vmatpush1.msra.mxu0 0.0
    %574 = vmatprep.subr.mxu0 0.0
    %575 = vmatpush1.msra.mxu0 0.0
    %576 = vmatprep.subr.mxu0 0.0
    %577 = vmatpush1.msra.mxu0 0.0
    %578 = vmatprep.subr.mxu0 0.0
    %579 = vmatpush1.msra.mxu0 0.0
    %580 = vmatprep.subr.mxu0 0.0
    %581 = vmatpush1.msra.mxu0 0.0
    %582 = vmatprep.subr.mxu0 0.0
    %583 = vmatpush1.msra.mxu0 0.0
    %584 = vmatprep.subr.mxu0 0.0
    %585 = vmatpush1.msra.mxu0 0.0
    %586 = vmatprep.subr.mxu0 0.0
    %587 = vmatpush1.msra.mxu0 0.0
    %588 = vmatprep.subr.mxu0 0.0
    %589 = vmatpush1.msra.mxu0 0.0
    %590 = vmatprep.subr.mxu0 0.0
    %591 = vmatpush1.msra.mxu0 0.0
    %592 = vmatprep.subr.mxu0 0.0
    %593 = vmatpush1.msra.mxu0 0.0
    %594 = vmatprep.subr.mxu0 0.0
    %595 = vmatpush1.msra.mxu0 0.0
    %596 = vmatprep.subr.mxu0 0.0
    %597 = vmatpush1.msra.mxu0 0.0
    %598 = vmatprep.subr.mxu0 0.0
    %599 = vmatpush1.msra.mxu0 0.0
    %600 = vmatprep.subr.mxu0 0.0
    %601 = vmatpush1.msra.mxu0 0.0
    %602 = vmatprep.subr.mxu0 0.0
    %603 = vmatpush1.msra.mxu0 0.0
    %604 = vmatprep.subr.mxu0 0.0
    %605 = vmatpush1.msra.mxu0 0.0
    %606 = vmatprep.subr.mxu0 0.0
    %607 = vmatpush1.msra.mxu0 0.0
    %608 = vmatprep.subr.mxu0 0.0
    %609 = vmatpush1.msra.mxu0 0.0
    %610 = vmatprep.subr.mxu0 0.0
    %611 = vmatpush1.msra.mxu0 0.0
    %612 = vmatprep.subr.mxu0 0.0
    %613 = vmatpush1.msra.mxu0 0.0
    %614 = vmatprep.subr.mxu0 0.0
    %615 = vmatpush1.msra.mxu0 0.0
    %616 = vmatprep.subr.mxu0 0.0
    %617 = vmatpush1.msra.mxu0 0.0
    %618 = vmatprep.subr.mxu0 0.0
    %619 = vmatpush1.msra.mxu0 0.0
    %620 = vmatprep.subr.mxu0 0.0
    %621 = vmatpush1.msra.mxu0 0.0
    %622 = vmatprep.subr.mxu0 0.0
    %623 = vmatpush1.msra.mxu0 0.0
    %624 = vmatprep.subr.mxu0 0.0
    %625 = vmatpush1.msra.mxu0 0.0
    %626 = vmatprep.mubr.f32.mxu0 0.0
    %v627 = vand.u32 %v65, 4294901760
    %628 = vmatmul.mubr.f32.gmra.mrb[0].mxu0 %v627
    %v629 = vpop.f32.mrb[0].mxu0
    %v630 = vadd.f32 %v540, %v629
    %v631 = vpop.f32.mrb[0].mxu0
    %632 = vmatprep.mubr.f32.mxu0 0.0
    %v633 = vand.u32 %v68, 4294901760
    %634 = vmatmul.mubr.f32.gmra.mrb[0].mxu0 %v633
    %v635 = vpop.f32.mrb[0].mxu0
    %v636 = vadd.f32 %v546, %v635
    %v637 = vpop.f32.mrb[0].mxu0
    %638 = vmatprep.mubr.f32.mxu0 0.0
    %v639 = vand.u32 %v71, 4294901760
    %640 = vmatmul.mubr.f32.gmra.mrb[0].mxu0 %v639
    %v641 = vpop.f32.mrb[0].mxu0
    %v642 = vadd.f32 %v552, %v641
    %v643 = vpop.f32.mrb[0].mxu0
    %644 = vmatprep.mubr.f32.mxu0 0.0
    %v645 = vand.u32 %v74, 4294901760
    %646 = vmatmul.mubr.f32.gmra.mrb[0].mxu0 %v645
    %v647 = vpop.f32.mrb[0].mxu0
    %v648 = vadd.f32 %v558, %v647
    %v649 = vpop.f32.mrb[0].mxu0
    %650 = vdwg.mxu0
    %v651 = vmax.f32 %v630, 0.0
    %v652 = vmax.f32 %v636, 0.0
    %v653 = vmax.f32 %v642, 0.0
    %v654 = vmax.f32 %v648, 0.0
    %v655 = vld [vmem:[%s2] sm:$0xff]
    %v656 = vld [vmem:[%s2 + $0x8] sm:$0xff]
    %v657 = vld [vmem:[%s2 + $0x10] sm:$0xff]
    %v658 = vld [vmem:[%s2 + $0x18] sm:$0xff]
    %660 = vset.pattern.permute.xlu0 0
    %661 = vperm.xlu0 %660, %v31
    %v662 = vpop.permute.xlu0 %661
    %665 = vset.pattern.permute.xlu0 0
    %666 = vperm.xlu0 %665, %v32
    %v667 = vpop.permute.xlu0 %666
    %670 = vset.pattern.permute.xlu0 0
    %671 = vperm.xlu0 %670, %v33
    %v672 = vpop.permute.xlu0 %671
    %675 = vset.pattern.permute.xlu0 0
    %676 = vperm.xlu0 %675, %v34
    %v677 = vpop.permute.xlu0 %676
    %vm679 = vcmask 261120
    %v681 = vsel %vm679, %v655, 0
    %v684 = vsel %vm679, %v656, 0
    %v687 = vsel %vm679, %v657, 0
    %v690 = vsel %vm679, %v658, 0
    %692 = vmatprep.subr.mxu0 0.0
    %v693 = vand.u32 %v651, 4294901760
    %694 = vmatpush1.msra.mxu0 %v693
    %695 = vmatprep.subr.mxu0 0.0
    %v696 = vand.u32 %v652, 4294901760
    %697 = vmatpush1.msra.mxu0 %v696
    %698 = vmatprep.subr.mxu0 0.0
    %v699 = vand.u32 %v653, 4294901760
    %700 = vmatpush1.msra.mxu0 %v699
    %701 = vmatprep.subr.mxu0 0.0
    %v702 = vand.u32 %v654, 4294901760
    %703 = vmatpush1.msra.mxu0 %v702
    %704 = vmatprep.subr.mxu0 0.0
    %705 = vmatpush1.msra.mxu0 0.0
    %706 = vmatprep.subr.mxu0 0.0
    %707 = vmatpush1.msra.mxu0 0.0
    %708 = vmatprep.subr.mxu0 0.0
    %709 = vmatpush1.msra.mxu0 0.0
    %710 = vmatprep.subr.mxu0 0.0
    %711 = vmatpush1.msra.mxu0 0.0
    %712 = vmatprep.subr.mxu0 0.0
    %713 = vmatpush1.msra.mxu0 0.0
    %714 = vmatprep.subr.mxu0 0.0
    %715 = vmatpush1.msra.mxu0 0.0
    %716 = vmatprep.subr.mxu0 0.0
    %717 = vmatpush1.msra.mxu0 0.0
    %718 = vmatprep.subr.mxu0 0.0
    %719 = vmatpush1.msra.mxu0 0.0
    %720 = vmatprep.subr.mxu0 0.0
    %721 = vmatpush1.msra.mxu0 0.0
    %722 = vmatprep.subr.mxu0 0.0
    %723 = vmatpush1.msra.mxu0 0.0
    %724 = vmatprep.subr.mxu0 0.0
    %725 = vmatpush1.msra.mxu0 0.0
    %726 = vmatprep.subr.mxu0 0.0
    %727 = vmatpush1.msra.mxu0 0.0
    %728 = vmatprep.subr.mxu0 0.0
    %729 = vmatpush1.msra.mxu0 0.0
    %730 = vmatprep.subr.mxu0 0.0
    %731 = vmatpush1.msra.mxu0 0.0
    %732 = vmatprep.subr.mxu0 0.0
    %733 = vmatpush1.msra.mxu0 0.0
    %734 = vmatprep.subr.mxu0 0.0
    %735 = vmatpush1.msra.mxu0 0.0
    %736 = vmatprep.subr.mxu0 0.0
    %737 = vmatpush1.msra.mxu0 0.0
    %738 = vmatprep.subr.mxu0 0.0
    %739 = vmatpush1.msra.mxu0 0.0
    %740 = vmatprep.subr.mxu0 0.0
    %741 = vmatpush1.msra.mxu0 0.0
    %742 = vmatprep.subr.mxu0 0.0
    %743 = vmatpush1.msra.mxu0 0.0
    %744 = vmatprep.subr.mxu0 0.0
    %745 = vmatpush1.msra.mxu0 0.0
    %746 = vmatprep.subr.mxu0 0.0
    %747 = vmatpush1.msra.mxu0 0.0
    %748 = vmatprep.subr.mxu0 0.0
    %749 = vmatpush1.msra.mxu0 0.0
    %750 = vmatprep.subr.mxu0 0.0
    %751 = vmatpush1.msra.mxu0 0.0
    %752 = vmatprep.subr.mxu0 0.0
    %753 = vmatpush1.msra.mxu0 0.0
    %754 = vmatprep.subr.mxu0 0.0
    %755 = vmatpush1.msra.mxu0 0.0
    %756 = vmatprep.subr.mxu0 0.0
    %757 = vmatpush1.msra.mxu0 0.0
    %758 = vmatprep.subr.mxu0 0.0
    %759 = vmatpush1.msra.mxu0 0.0
    %760 = vmatprep.mubr.f32.mxu0 0.0
    %v761 = vand.u32 %v681, 4294901760
    %v762 = vsub.f32 %v681, %v761
    %v763 = vand.u32 %v762, 4294901760
    %v764 = vsub.f32 %v762, %v763
    %v765 = vand.u32 %v764, 4294901760
    %766 = vmatmul.mubr.f32.gmra.mrb[0].mxu0 %v765
    %v767 = vpop.f32.mrb[0].mxu0
    %v768 = vadd.f32 %v662, %v767
    %v769 = vpop.f32.mrb[0].mxu0
    %770 = vmatprep.mubr.f32.mxu0 0.0
    %v771 = vand.u32 %v684, 4294901760
    %v772 = vsub.f32 %v684, %v771
    %v773 = vand.u32 %v772, 4294901760
    %v774 = vsub.f32 %v772, %v773
    %v775 = vand.u32 %v774, 4294901760
    %776 = vmatmul.mubr.f32.gmra.mrb[0].mxu0 %v775
    %v777 = vpop.f32.mrb[0].mxu0
    %v778 = vadd.f32 %v667, %v777
    %v779 = vpop.f32.mrb[0].mxu0
    %780 = vmatprep.mubr.f32.mxu0 0.0
    %v781 = vand.u32 %v687, 4294901760
    %v782 = vsub.f32 %v687, %v781
    %v783 = vand.u32 %v782, 4294901760
    %v784 = vsub.f32 %v782, %v783
    %v785 = vand.u32 %v784, 4294901760
    %786 = vmatmul.mubr.f32.gmra.mrb[0].mxu0 %v785
    %v787 = vpop.f32.mrb[0].mxu0
    %v788 = vadd.f32 %v672, %v787
    %v789 = vpop.f32.mrb[0].mxu0
    %790 = vmatprep.mubr.f32.mxu0 0.0
    %v791 = vand.u32 %v690, 4294901760
    %v792 = vsub.f32 %v690, %v791
    %v793 = vand.u32 %v792, 4294901760
    %v794 = vsub.f32 %v792, %v793
    %v795 = vand.u32 %v794, 4294901760
    %796 = vmatmul.mubr.f32.gmra.mrb[0].mxu0 %v795
    %v797 = vpop.f32.mrb[0].mxu0
    %v798 = vadd.f32 %v677, %v797
    %v799 = vpop.f32.mrb[0].mxu0
    %800 = vdwg.mxu0
    %801 = vmatprep.subr.mxu0 0.0
    %v802 = vand.u32 %v651, 4294901760
    %v803 = vsub.f32 %v651, %v802
    %v804 = vand.u32 %v803, 4294901760
    %v805 = vsub.f32 %v803, %v804
    %v806 = vand.u32 %v805, 4294901760
    %807 = vmatpush1.msra.mxu0 %v806
    %808 = vmatprep.subr.mxu0 0.0
    %v809 = vand.u32 %v652, 4294901760
    %v810 = vsub.f32 %v652, %v809
    %v811 = vand.u32 %v810, 4294901760
    %v812 = vsub.f32 %v810, %v811
    %v813 = vand.u32 %v812, 4294901760
    %814 = vmatpush1.msra.mxu0 %v813
    %815 = vmatprep.subr.mxu0 0.0
    %v816 = vand.u32 %v653, 4294901760
    %v817 = vsub.f32 %v653, %v816
    %v818 = vand.u32 %v817, 4294901760
    %v819 = vsub.f32 %v817, %v818
    %v820 = vand.u32 %v819, 4294901760
    %821 = vmatpush1.msra.mxu0 %v820
    %822 = vmatprep.subr.mxu0 0.0
    %v823 = vand.u32 %v654, 4294901760
    %v824 = vsub.f32 %v654, %v823
    %v825 = vand.u32 %v824, 4294901760
    %v826 = vsub.f32 %v824, %v825
    %v827 = vand.u32 %v826, 4294901760
    %828 = vmatpush1.msra.mxu0 %v827
    %829 = vmatprep.subr.mxu0 0.0
    %830 = vmatpush1.msra.mxu0 0.0
    %831 = vmatprep.subr.mxu0 0.0
    %832 = vmatpush1.msra.mxu0 0.0
    %833 = vmatprep.subr.mxu0 0.0
    %834 = vmatpush1.msra.mxu0 0.0
    %835 = vmatprep.subr.mxu0 0.0
    %836 = vmatpush1.msra.mxu0 0.0
    %837 = vmatprep.subr.mxu0 0.0
    %838 = vmatpush1.msra.mxu0 0.0
    %839 = vmatprep.subr.mxu0 0.0
    %840 = vmatpush1.msra.mxu0 0.0
    %841 = vmatprep.subr.mxu0 0.0
    %842 = vmatpush1.msra.mxu0 0.0
    %843 = vmatprep.subr.mxu0 0.0
    %844 = vmatpush1.msra.mxu0 0.0
    %845 = vmatprep.subr.mxu0 0.0
    %846 = vmatpush1.msra.mxu0 0.0
    %847 = vmatprep.subr.mxu0 0.0
    %848 = vmatpush1.msra.mxu0 0.0
    %849 = vmatprep.subr.mxu0 0.0
    %850 = vmatpush1.msra.mxu0 0.0
    %851 = vmatprep.subr.mxu0 0.0
    %852 = vmatpush1.msra.mxu0 0.0
    %853 = vmatprep.subr.mxu0 0.0
    %854 = vmatpush1.msra.mxu0 0.0
    %855 = vmatprep.subr.mxu0 0.0
    %856 = vmatpush1.msra.mxu0 0.0
    %857 = vmatprep.subr.mxu0 0.0
    %858 = vmatpush1.msra.mxu0 0.0
    %859 = vmatprep.subr.mxu0 0.0
    %860 = vmatpush1.msra.mxu0 0.0
    %861 = vmatprep.subr.mxu0 0.0
    %862 = vmatpush1.msra.mxu0 0.0
    %863 = vmatprep.subr.mxu0 0.0
    %864 = vmatpush1.msra.mxu0 0.0
    %865 = vmatprep.subr.mxu0 0.0
    %866 = vmatpush1.msra.mxu0 0.0
    %867 = vmatprep.subr.mxu0 0.0
    %868 = vmatpush1.msra.mxu0 0.0
    %869 = vmatprep.subr.mxu0 0.0
    %870 = vmatpush1.msra.mxu0 0.0
    %871 = vmatprep.subr.mxu0 0.0
    %872 = vmatpush1.msra.mxu0 0.0
    %873 = vmatprep.subr.mxu0 0.0
    %874 = vmatpush1.msra.mxu0 0.0
    %875 = vmatprep.subr.mxu0 0.0
    %876 = vmatpush1.msra.mxu0 0.0
    %877 = vmatprep.subr.mxu0 0.0
    %878 = vmatpush1.msra.mxu0 0.0
    %879 = vmatprep.subr.mxu0 0.0
    %880 = vmatpush1.msra.mxu0 0.0
    %881 = vmatprep.subr.mxu0 0.0
    %882 = vmatpush1.msra.mxu0 0.0
    %883 = vmatprep.subr.mxu0 0.0
    %884 = vmatpush1.msra.mxu0 0.0
    %885 = vmatprep.mubr.f32.mxu0 0.0
    %v886 = vand.u32 %v681, 4294901760
    %887 = vmatmul.mubr.f32.gmra.mrb[0].mxu0 %v886
    %v888 = vpop.f32.mrb[0].mxu0
    %v889 = vadd.f32 %v768, %v888
    %v890 = vpop.f32.mrb[0].mxu0
    %891 = vmatprep.mubr.f32.mxu0 0.0
    %v892 = vand.u32 %v684, 4294901760
    %893 = vmatmul.mubr.f32.gmra.mrb[0].mxu0 %v892
    %v894 = vpop.f32.mrb[0].mxu0
    %v895 = vadd.f32 %v778, %v894
    %v896 = vpop.f32.mrb[0].mxu0
    %897 = vmatprep.mubr.f32.mxu0 0.0
    %v898 = vand.u32 %v687, 4294901760
    %899 = vmatmul.mubr.f32.gmra.mrb[0].mxu0 %v898
    %v900 = vpop.f32.mrb[0].mxu0
    %v901 = vadd.f32 %v788, %v900
    %v902 = vpop.f32.mrb[0].mxu0
    %903 = vmatprep.mubr.f32.mxu0 0.0
    %v904 = vand.u32 %v690, 4294901760
    %905 = vmatmul.mubr.f32.gmra.mrb[0].mxu0 %v904
    %v906 = vpop.f32.mrb[0].mxu0
    %v907 = vadd.f32 %v798, %v906
    %v908 = vpop.f32.mrb[0].mxu0
    %909 = vdwg.mxu0
    %910 = vmatprep.subr.mxu0 0.0
    %v911 = vand.u32 %v651, 4294901760
    %v912 = vsub.f32 %v651, %v911
    %913 = vmatpush1.msra.mxu0 %v912
    %914 = vmatprep.subr.mxu0 0.0
    %v915 = vand.u32 %v652, 4294901760
    %v916 = vsub.f32 %v652, %v915
    %917 = vmatpush1.msra.mxu0 %v916
    %918 = vmatprep.subr.mxu0 0.0
    %v919 = vand.u32 %v653, 4294901760
    %v920 = vsub.f32 %v653, %v919
    %921 = vmatpush1.msra.mxu0 %v920
    %922 = vmatprep.subr.mxu0 0.0
    %v923 = vand.u32 %v654, 4294901760
    %v924 = vsub.f32 %v654, %v923
    %925 = vmatpush1.msra.mxu0 %v924
    %926 = vmatprep.subr.mxu0 0.0
    %927 = vmatpush1.msra.mxu0 0.0
    %928 = vmatprep.subr.mxu0 0.0
    %929 = vmatpush1.msra.mxu0 0.0
    %930 = vmatprep.subr.mxu0 0.0
    %931 = vmatpush1.msra.mxu0 0.0
    %932 = vmatprep.subr.mxu0 0.0
    %933 = vmatpush1.msra.mxu0 0.0
    %934 = vmatprep.subr.mxu0 0.0
    %935 = vmatpush1.msra.mxu0 0.0
    %936 = vmatprep.subr.mxu0 0.0
    %937 = vmatpush1.msra.mxu0 0.0
    %938 = vmatprep.subr.mxu0 0.0
    %939 = vmatpush1.msra.mxu0 0.0
    %940 = vmatprep.subr.mxu0 0.0
    %941 = vmatpush1.msra.mxu0 0.0
    %942 = vmatprep.subr.mxu0 0.0
    %943 = vmatpush1.msra.mxu0 0.0
    %944 = vmatprep.subr.mxu0 0.0
    %945 = vmatpush1.msra.mxu0 0.0
    %946 = vmatprep.subr.mxu0 0.0
    %947 = vmatpush1.msra.mxu0 0.0
    %948 = vmatprep.subr.mxu0 0.0
    %949 = vmatpush1.msra.mxu0 0.0
    %950 = vmatprep.subr.mxu0 0.0
    %951 = vmatpush1.msra.mxu0 0.0
    %952 = vmatprep.subr.mxu0 0.0
    %953 = vmatpush1.msra.mxu0 0.0
    %954 = vmatprep.subr.mxu0 0.0
    %955 = vmatpush1.msra.mxu0 0.0
    %956 = vmatprep.subr.mxu0 0.0
    %957 = vmatpush1.msra.mxu0 0.0
    %958 = vmatprep.subr.mxu0 0.0
    %959 = vmatpush1.msra.mxu0 0.0
    %960 = vmatprep.subr.mxu0 0.0
    %961 = vmatpush1.msra.mxu0 0.0
    %962 = vmatprep.subr.mxu0 0.0
    %963 = vmatpush1.msra.mxu0 0.0
    %964 = vmatprep.subr.mxu0 0.0
    %965 = vmatpush1.msra.mxu0 0.0
    %966 = vmatprep.subr.mxu0 0.0
    %967 = vmatpush1.msra.mxu0 0.0
    %968 = vmatprep.subr.mxu0 0.0
    %969 = vmatpush1.msra.mxu0 0.0
    %970 = vmatprep.subr.mxu0 0.0
    %971 = vmatpush1.msra.mxu0 0.0
    %972 = vmatprep.subr.mxu0 0.0
    %973 = vmatpush1.msra.mxu0 0.0
    %974 = vmatprep.subr.mxu0 0.0
    %975 = vmatpush1.msra.mxu0 0.0
    %976 = vmatprep.subr.mxu0 0.0
    %977 = vmatpush1.msra.mxu0 0.0
    %978 = vmatprep.subr.mxu0 0.0
    %979 = vmatpush1.msra.mxu0 0.0
    %980 = vmatprep.subr.mxu0 0.0
    %981 = vmatpush1.msra.mxu0 0.0
    %982 = vmatprep.mubr.f32.mxu0 0.0
    %v983 = vand.u32 %v681, 4294901760
    %v984 = vsub.f32 %v681, %v983
    %985 = vmatmul.mubr.f32.gmra.mrb[0].mxu0 %v984
    %v986 = vpop.f32.mrb[0].mxu0
    %v987 = vadd.f32 %v889, %v986
    %v988 = vpop.f32.mrb[0].mxu0
    %989 = vmatprep.mubr.f32.mxu0 0.0
    %v990 = vand.u32 %v684, 4294901760
    %v991 = vsub.f32 %v684, %v990
    %992 = vmatmul.mubr.f32.gmra.mrb[0].mxu0 %v991
    %v993 = vpop.f32.mrb[0].mxu0
    %v994 = vadd.f32 %v895, %v993
    %v995 = vpop.f32.mrb[0].mxu0
    %996 = vmatprep.mubr.f32.mxu0 0.0
    %v997 = vand.u32 %v687, 4294901760
    %v998 = vsub.f32 %v687, %v997
    %999 = vmatmul.mubr.f32.gmra.mrb[0].mxu0 %v998
    %v1000 = vpop.f32.mrb[0].mxu0
    %v1001 = vadd.f32 %v901, %v1000
    %v1002 = vpop.f32.mrb[0].mxu0
    %1003 = vmatprep.mubr.f32.mxu0 0.0
    %v1004 = vand.u32 %v690, 4294901760
    %v1005 = vsub.f32 %v690, %v1004
    %1006 = vmatmul.mubr.f32.gmra.mrb[0].mxu0 %v1005
    %v1007 = vpop.f32.mrb[0].mxu0
    %v1008 = vadd.f32 %v907, %v1007
    %v1009 = vpop.f32.mrb[0].mxu0
    %1010 = vdwg.mxu0
    %1011 = vmatprep.subr.mxu0 0.0
    %v1012 = vand.u32 %v651, 4294901760
    %1013 = vmatpush1.msra.mxu0 %v1012
    %1014 = vmatprep.subr.mxu0 0.0
    %v1015 = vand.u32 %v652, 4294901760
    %1016 = vmatpush1.msra.mxu0 %v1015
    %1017 = vmatprep.subr.mxu0 0.0
    %v1018 = vand.u32 %v653, 4294901760
    %1019 = vmatpush1.msra.mxu0 %v1018
    %1020 = vmatprep.subr.mxu0 0.0
    %v1021 = vand.u32 %v654, 4294901760
    %1022 = vmatpush1.msra.mxu0 %v1021
    %1023 = vmatprep.subr.mxu0 0.0
    %1024 = vmatpush1.msra.mxu0 0.0
    %1025 = vmatprep.subr.mxu0 0.0
    %1026 = vmatpush1.msra.mxu0 0.0
    %1027 = vmatprep.subr.mxu0 0.0
    %1028 = vmatpush1.msra.mxu0 0.0
    %1029 = vmatprep.subr.mxu0 0.0
    %1030 = vmatpush1.msra.mxu0 0.0
    %1031 = vmatprep.subr.mxu0 0.0
    %1032 = vmatpush1.msra.mxu0 0.0
    %1033 = vmatprep.subr.mxu0 0.0
    %1034 = vmatpush1.msra.mxu0 0.0
    %1035 = vmatprep.subr.mxu0 0.0
    %1036 = vmatpush1.msra.mxu0 0.0
    %1037 = vmatprep.subr.mxu0 0.0
    %1038 = vmatpush1.msra.mxu0 0.0
    %1039 = vmatprep.subr.mxu0 0.0
    %1040 = vmatpush1.msra.mxu0 0.0
    %1041 = vmatprep.subr.mxu0 0.0
    %1042 = vmatpush1.msra.mxu0 0.0
    %1043 = vmatprep.subr.mxu0 0.0
    %1044 = vmatpush1.msra.mxu0 0.0
    %1045 = vmatprep.subr.mxu0 0.0
    %1046 = vmatpush1.msra.mxu0 0.0
    %1047 = vmatprep.subr.mxu0 0.0
    %1048 = vmatpush1.msra.mxu0 0.0
    %1049 = vmatprep.subr.mxu0 0.0
    %1050 = vmatpush1.msra.mxu0 0.0
    %1051 = vmatprep.subr.mxu0 0.0
    %1052 = vmatpush1.msra.mxu0 0.0
    %1053 = vmatprep.subr.mxu0 0.0
    %1054 = vmatpush1.msra.mxu0 0.0
    %1055 = vmatprep.subr.mxu0 0.0
    %1056 = vmatpush1.msra.mxu0 0.0
    %1057 = vmatprep.subr.mxu0 0.0
    %1058 = vmatpush1.msra.mxu0 0.0
    %1059 = vmatprep.subr.mxu0 0.0
    %1060 = vmatpush1.msra.mxu0 0.0
    %1061 = vmatprep.subr.mxu0 0.0
    %1062 = vmatpush1.msra.mxu0 0.0
    %1063 = vmatprep.subr.mxu0 0.0
    %1064 = vmatpush1.msra.mxu0 0.0
    %1065 = vmatprep.subr.mxu0 0.0
    %1066 = vmatpush1.msra.mxu0 0.0
    %1067 = vmatprep.subr.mxu0 0.0
    %1068 = vmatpush1.msra.mxu0 0.0
    %1069 = vmatprep.subr.mxu0 0.0
    %1070 = vmatpush1.msra.mxu0 0.0
    %1071 = vmatprep.subr.mxu0 0.0
    %1072 = vmatpush1.msra.mxu0 0.0
    %1073 = vmatprep.subr.mxu0 0.0
    %1074 = vmatpush1.msra.mxu0 0.0
    %1075 = vmatprep.subr.mxu0 0.0
    %1076 = vmatpush1.msra.mxu0 0.0
    %1077 = vmatprep.subr.mxu0 0.0
    %1078 = vmatpush1.msra.mxu0 0.0
    %1079 = vmatprep.mubr.f32.mxu0 0.0
    %v1080 = vand.u32 %v681, 4294901760
    %v1081 = vsub.f32 %v681, %v1080
    %v1082 = vand.u32 %v1081, 4294901760
    %1083 = vmatmul.mubr.f32.gmra.mrb[0].mxu0 %v1082
    %v1084 = vpop.f32.mrb[0].mxu0
    %v1085 = vadd.f32 %v987, %v1084
    %v1086 = vpop.f32.mrb[0].mxu0
    %1087 = vmatprep.mubr.f32.mxu0 0.0
    %v1088 = vand.u32 %v684, 4294901760
    %v1089 = vsub.f32 %v684, %v1088
    %v1090 = vand.u32 %v1089, 4294901760
    %1091 = vmatmul.mubr.f32.gmra.mrb[0].mxu0 %v1090
    %v1092 = vpop.f32.mrb[0].mxu0
    %v1093 = vadd.f32 %v994, %v1092
    %v1094 = vpop.f32.mrb[0].mxu0
    %1095 = vmatprep.mubr.f32.mxu0 0.0
    %v1096 = vand.u32 %v687, 4294901760
    %v1097 = vsub.f32 %v687, %v1096
    %v1098 = vand.u32 %v1097, 4294901760
    %1099 = vmatmul.mubr.f32.gmra.mrb[0].mxu0 %v1098
    %v1100 = vpop.f32.mrb[0].mxu0
    %v1101 = vadd.f32 %v1001, %v1100
    %v1102 = vpop.f32.mrb[0].mxu0
    %1103 = vmatprep.mubr.f32.mxu0 0.0
    %v1104 = vand.u32 %v690, 4294901760
    %v1105 = vsub.f32 %v690, %v1104
    %v1106 = vand.u32 %v1105, 4294901760
    %1107 = vmatmul.mubr.f32.gmra.mrb[0].mxu0 %v1106
    %v1108 = vpop.f32.mrb[0].mxu0
    %v1109 = vadd.f32 %v1008, %v1108
    %v1110 = vpop.f32.mrb[0].mxu0
    %1111 = vdwg.mxu0
    %1112 = vmatprep.subr.mxu0 0.0
    %v1113 = vand.u32 %v651, 4294901760
    %v1114 = vsub.f32 %v651, %v1113
    %v1115 = vand.u32 %v1114, 4294901760
    %1116 = vmatpush1.msra.mxu0 %v1115
    %1117 = vmatprep.subr.mxu0 0.0
    %v1118 = vand.u32 %v652, 4294901760
    %v1119 = vsub.f32 %v652, %v1118
    %v1120 = vand.u32 %v1119, 4294901760
    %1121 = vmatpush1.msra.mxu0 %v1120
    %1122 = vmatprep.subr.mxu0 0.0
    %v1123 = vand.u32 %v653, 4294901760
    %v1124 = vsub.f32 %v653, %v1123
    %v1125 = vand.u32 %v1124, 4294901760
    %1126 = vmatpush1.msra.mxu0 %v1125
    %1127 = vmatprep.subr.mxu0 0.0
    %v1128 = vand.u32 %v654, 4294901760
    %v1129 = vsub.f32 %v654, %v1128
    %v1130 = vand.u32 %v1129, 4294901760
    %1131 = vmatpush1.msra.mxu0 %v1130
    %1132 = vmatprep.subr.mxu0 0.0
    %1133 = vmatpush1.msra.mxu0 0.0
    %1134 = vmatprep.subr.mxu0 0.0
    %1135 = vmatpush1.msra.mxu0 0.0
    %1136 = vmatprep.subr.mxu0 0.0
    %1137 = vmatpush1.msra.mxu0 0.0
    %1138 = vmatprep.subr.mxu0 0.0
    %1139 = vmatpush1.msra.mxu0 0.0
    %1140 = vmatprep.subr.mxu0 0.0
    %1141 = vmatpush1.msra.mxu0 0.0
    %1142 = vmatprep.subr.mxu0 0.0
    %1143 = vmatpush1.msra.mxu0 0.0
    %1144 = vmatprep.subr.mxu0 0.0
    %1145 = vmatpush1.msra.mxu0 0.0
    %1146 = vmatprep.subr.mxu0 0.0
    %1147 = vmatpush1.msra.mxu0 0.0
    %1148 = vmatprep.subr.mxu0 0.0
    %1149 = vmatpush1.msra.mxu0 0.0
    %1150 = vmatprep.subr.mxu0 0.0
    %1151 = vmatpush1.msra.mxu0 0.0
    %1152 = vmatprep.subr.mxu0 0.0
    %1153 = vmatpush1.msra.mxu0 0.0
    %1154 = vmatprep.subr.mxu0 0.0
    %1155 = vmatpush1.msra.mxu0 0.0
    %1156 = vmatprep.subr.mxu0 0.0
    %1157 = vmatpush1.msra.mxu0 0.0
    %1158 = vmatprep.subr.mxu0 0.0
    %1159 = vmatpush1.msra.mxu0 0.0
    %1160 = vmatprep.subr.mxu0 0.0
    %1161 = vmatpush1.msra.mxu0 0.0
    %1162 = vmatprep.subr.mxu0 0.0
    %1163 = vmatpush1.msra.mxu0 0.0
    %1164 = vmatprep.subr.mxu0 0.0
    %1165 = vmatpush1.msra.mxu0 0.0
    %1166 = vmatprep.subr.mxu0 0.0
    %1167 = vmatpush1.msra.mxu0 0.0
    %1168 = vmatprep.subr.mxu0 0.0
    %1169 = vmatpush1.msra.mxu0 0.0
    %1170 = vmatprep.subr.mxu0 0.0
    %1171 = vmatpush1.msra.mxu0 0.0
    %1172 = vmatprep.subr.mxu0 0.0
    %1173 = vmatpush1.msra.mxu0 0.0
    %1174 = vmatprep.subr.mxu0 0.0
    %1175 = vmatpush1.msra.mxu0 0.0
    %1176 = vmatprep.subr.mxu0 0.0
    %1177 = vmatpush1.msra.mxu0 0.0
    %1178 = vmatprep.subr.mxu0 0.0
    %1179 = vmatpush1.msra.mxu0 0.0
    %1180 = vmatprep.subr.mxu0 0.0
    %1181 = vmatpush1.msra.mxu0 0.0
    %1182 = vmatprep.subr.mxu0 0.0
    %1183 = vmatpush1.msra.mxu0 0.0
    %1184 = vmatprep.subr.mxu0 0.0
    %1185 = vmatpush1.msra.mxu0 0.0
    %1186 = vmatprep.subr.mxu0 0.0
    %1187 = vmatpush1.msra.mxu0 0.0
    %1188 = vmatprep.mubr.f32.mxu0 0.0
    %v1189 = vand.u32 %v681, 4294901760
    %1190 = vmatmul.mubr.f32.gmra.mrb[0].mxu0 %v1189
    %v1191 = vpop.f32.mrb[0].mxu0
    %v1192 = vadd.f32 %v1085, %v1191
    %v1193 = vpop.f32.mrb[0].mxu0
    %1194 = vmatprep.mubr.f32.mxu0 0.0
    %v1195 = vand.u32 %v684, 4294901760
    %1196 = vmatmul.mubr.f32.gmra.mrb[0].mxu0 %v1195
    %v1197 = vpop.f32.mrb[0].mxu0
    %v1198 = vadd.f32 %v1093, %v1197
    %v1199 = vpop.f32.mrb[0].mxu0
    %1200 = vmatprep.mubr.f32.mxu0 0.0
    %v1201 = vand.u32 %v687, 4294901760
    %1202 = vmatmul.mubr.f32.gmra.mrb[0].mxu0 %v1201
    %v1203 = vpop.f32.mrb[0].mxu0
    %v1204 = vadd.f32 %v1101, %v1203
    %v1205 = vpop.f32.mrb[0].mxu0
    %1206 = vmatprep.mubr.f32.mxu0 0.0
    %v1207 = vand.u32 %v690, 4294901760
    %1208 = vmatmul.mubr.f32.gmra.mrb[0].mxu0 %v1207
    %v1209 = vpop.f32.mrb[0].mxu0
    %v1210 = vadd.f32 %v1109, %v1209
    %v1211 = vpop.f32.mrb[0].mxu0
    %1212 = vdwg.mxu0
    %1213 = vmatprep.subr.mxu0 0.0
    %v1214 = vand.u32 %v651, 4294901760
    %1215 = vmatpush1.msra.mxu0 %v1214
    %1216 = vmatprep.subr.mxu0 0.0
    %v1217 = vand.u32 %v652, 4294901760
    %1218 = vmatpush1.msra.mxu0 %v1217
    %1219 = vmatprep.subr.mxu0 0.0
    %v1220 = vand.u32 %v653, 4294901760
    %1221 = vmatpush1.msra.mxu0 %v1220
    %1222 = vmatprep.subr.mxu0 0.0
    %v1223 = vand.u32 %v654, 4294901760
    %1224 = vmatpush1.msra.mxu0 %v1223
    %1225 = vmatprep.subr.mxu0 0.0
    %1226 = vmatpush1.msra.mxu0 0.0
    %1227 = vmatprep.subr.mxu0 0.0
    %1228 = vmatpush1.msra.mxu0 0.0
    %1229 = vmatprep.subr.mxu0 0.0
    %1230 = vmatpush1.msra.mxu0 0.0
    %1231 = vmatprep.subr.mxu0 0.0
    %1232 = vmatpush1.msra.mxu0 0.0
    %1233 = vmatprep.subr.mxu0 0.0
    %1234 = vmatpush1.msra.mxu0 0.0
    %1235 = vmatprep.subr.mxu0 0.0
    %1236 = vmatpush1.msra.mxu0 0.0
    %1237 = vmatprep.subr.mxu0 0.0
    %1238 = vmatpush1.msra.mxu0 0.0
    %1239 = vmatprep.subr.mxu0 0.0
    %1240 = vmatpush1.msra.mxu0 0.0
    %1241 = vmatprep.subr.mxu0 0.0
    %1242 = vmatpush1.msra.mxu0 0.0
    %1243 = vmatprep.subr.mxu0 0.0
    %1244 = vmatpush1.msra.mxu0 0.0
    %1245 = vmatprep.subr.mxu0 0.0
    %1246 = vmatpush1.msra.mxu0 0.0
    %1247 = vmatprep.subr.mxu0 0.0
    %1248 = vmatpush1.msra.mxu0 0.0
    %1249 = vmatprep.subr.mxu0 0.0
    %1250 = vmatpush1.msra.mxu0 0.0
    %1251 = vmatprep.subr.mxu0 0.0
    %1252 = vmatpush1.msra.mxu0 0.0
    %1253 = vmatprep.subr.mxu0 0.0
    %1254 = vmatpush1.msra.mxu0 0.0
    %1255 = vmatprep.subr.mxu0 0.0
    %1256 = vmatpush1.msra.mxu0 0.0
    %1257 = vmatprep.subr.mxu0 0.0
    %1258 = vmatpush1.msra.mxu0 0.0
    %1259 = vmatprep.subr.mxu0 0.0
    %1260 = vmatpush1.msra.mxu0 0.0
    %1261 = vmatprep.subr.mxu0 0.0
    %1262 = vmatpush1.msra.mxu0 0.0
    %1263 = vmatprep.subr.mxu0 0.0
    %1264 = vmatpush1.msra.mxu0 0.0
    %1265 = vmatprep.subr.mxu0 0.0
    %1266 = vmatpush1.msra.mxu0 0.0
    %1267 = vmatprep.subr.mxu0 0.0
    %1268 = vmatpush1.msra.mxu0 0.0
    %1269 = vmatprep.subr.mxu0 0.0
    %1270 = vmatpush1.msra.mxu0 0.0
    %1271 = vmatprep.subr.mxu0 0.0
    %1272 = vmatpush1.msra.mxu0 0.0
    %1273 = vmatprep.subr.mxu0 0.0
    %1274 = vmatpush1.msra.mxu0 0.0
    %1275 = vmatprep.subr.mxu0 0.0
    %1276 = vmatpush1.msra.mxu0 0.0
    %1277 = vmatprep.subr.mxu0 0.0
    %1278 = vmatpush1.msra.mxu0 0.0
    %1279 = vmatprep.subr.mxu0 0.0
    %1280 = vmatpush1.msra.mxu0 0.0
    %1281 = vmatprep.mubr.f32.mxu0 0.0
    %v1282 = vand.u32 %v681, 4294901760
    %1283 = vmatmul.mubr.f32.gmra.mrb[0].mxu0 %v1282
    %v1284 = vpop.f32.mrb[0].mxu0
    %v1285 = vadd.f32 %v1192, %v1284
    %v1286 = vpop.f32.mrb[0].mxu0
    %1287 = vmatprep.mubr.f32.mxu0 0.0
    %v1288 = vand.u32 %v684, 4294901760
    %1289 = vmatmul.mubr.f32.gmra.mrb[0].mxu0 %v1288
    %v1290 = vpop.f32.mrb[0].mxu0
    %v1291 = vadd.f32 %v1198, %v1290
    %v1292 = vpop.f32.mrb[0].mxu0
    %1293 = vmatprep.mubr.f32.mxu0 0.0
    %v1294 = vand.u32 %v687, 4294901760
    %1295 = vmatmul.mubr.f32.gmra.mrb[0].mxu0 %v1294
    %v1296 = vpop.f32.mrb[0].mxu0
    %v1297 = vadd.f32 %v1204, %v1296
    %v1298 = vpop.f32.mrb[0].mxu0
    %1299 = vmatprep.mubr.f32.mxu0 0.0
    %v1300 = vand.u32 %v690, 4294901760
    %1301 = vmatmul.mubr.f32.gmra.mrb[0].mxu0 %v1300
    %v1302 = vpop.f32.mrb[0].mxu0
    %v1303 = vadd.f32 %v1210, %v1302
    %v1304 = vpop.f32.mrb[0].mxu0
    %1305 = vdwg.mxu0
    %v1306 = vmax.f32 %v1285, 0.0
    %v1307 = vmax.f32 %v1291, 0.0
    %v1308 = vmax.f32 %v1297, 0.0
    %v1309 = vmax.f32 %v1303, 0.0
    %v1310 = vld [vmem:[%s3] sm:$0xff]
    %1312 = vset.pattern.permute.xlu0 0
    %1313 = vperm.xlu0 %1312, %v35
    %v1314 = vpop.permute.xlu0 %1313
    %v1317 = vsel %vm679, %v1310, 0
    %1319 = vmatprep.subr.mxu0 0.0
    %v1320 = vand.u32 %v1306, 4294901760
    %1321 = vmatpush1.msra.mxu0 %v1320
    %1322 = vmatprep.subr.mxu0 0.0
    %v1323 = vand.u32 %v1307, 4294901760
    %1324 = vmatpush1.msra.mxu0 %v1323
    %1325 = vmatprep.subr.mxu0 0.0
    %v1326 = vand.u32 %v1308, 4294901760
    %1327 = vmatpush1.msra.mxu0 %v1326
    %1328 = vmatprep.subr.mxu0 0.0
    %v1329 = vand.u32 %v1309, 4294901760
    %1330 = vmatpush1.msra.mxu0 %v1329
    %1331 = vmatprep.subr.mxu0 0.0
    %1332 = vmatpush1.msra.mxu0 0.0
    %1333 = vmatprep.subr.mxu0 0.0
    %1334 = vmatpush1.msra.mxu0 0.0
    %1335 = vmatprep.subr.mxu0 0.0
    %1336 = vmatpush1.msra.mxu0 0.0
    %1337 = vmatprep.subr.mxu0 0.0
    %1338 = vmatpush1.msra.mxu0 0.0
    %1339 = vmatprep.subr.mxu0 0.0
    %1340 = vmatpush1.msra.mxu0 0.0
    %1341 = vmatprep.subr.mxu0 0.0
    %1342 = vmatpush1.msra.mxu0 0.0
    %1343 = vmatprep.subr.mxu0 0.0
    %1344 = vmatpush1.msra.mxu0 0.0
    %1345 = vmatprep.subr.mxu0 0.0
    %1346 = vmatpush1.msra.mxu0 0.0
    %1347 = vmatprep.subr.mxu0 0.0
    %1348 = vmatpush1.msra.mxu0 0.0
    %1349 = vmatprep.subr.mxu0 0.0
    %1350 = vmatpush1.msra.mxu0 0.0
    %1351 = vmatprep.subr.mxu0 0.0
    %1352 = vmatpush1.msra.mxu0 0.0
    %1353 = vmatprep.subr.mxu0 0.0
    %1354 = vmatpush1.msra.mxu0 0.0
    %1355 = vmatprep.subr.mxu0 0.0
    %1356 = vmatpush1.msra.mxu0 0.0
    %1357 = vmatprep.subr.mxu0 0.0
    %1358 = vmatpush1.msra.mxu0 0.0
    %1359 = vmatprep.subr.mxu0 0.0
    %1360 = vmatpush1.msra.mxu0 0.0
    %1361 = vmatprep.subr.mxu0 0.0
    %1362 = vmatpush1.msra.mxu0 0.0
    %1363 = vmatprep.subr.mxu0 0.0
    %1364 = vmatpush1.msra.mxu0 0.0
    %1365 = vmatprep.subr.mxu0 0.0
    %1366 = vmatpush1.msra.mxu0 0.0
    %1367 = vmatprep.subr.mxu0 0.0
    %1368 = vmatpush1.msra.mxu0 0.0
    %1369 = vmatprep.subr.mxu0 0.0
    %1370 = vmatpush1.msra.mxu0 0.0
    %1371 = vmatprep.subr.mxu0 0.0
    %1372 = vmatpush1.msra.mxu0 0.0
    %1373 = vmatprep.subr.mxu0 0.0
    %1374 = vmatpush1.msra.mxu0 0.0
    %1375 = vmatprep.subr.mxu0 0.0
    %1376 = vmatpush1.msra.mxu0 0.0
    %1377 = vmatprep.subr.mxu0 0.0
    %1378 = vmatpush1.msra.mxu0 0.0
    %1379 = vmatprep.subr.mxu0 0.0
    %1380 = vmatpush1.msra.mxu0 0.0
    %1381 = vmatprep.subr.mxu0 0.0
    %1382 = vmatpush1.msra.mxu0 0.0
    %1383 = vmatprep.subr.mxu0 0.0
    %1384 = vmatpush1.msra.mxu0 0.0
    %1385 = vmatprep.subr.mxu0 0.0
    %1386 = vmatpush1.msra.mxu0 0.0
    %1387 = vmatprep.mubr.f32.mxu0 0.0
    %v1388 = vand.u32 %v1317, 4294901760
    %v1389 = vsub.f32 %v1317, %v1388
    %v1390 = vand.u32 %v1389, 4294901760
    %v1391 = vsub.f32 %v1389, %v1390
    %v1392 = vand.u32 %v1391, 4294901760
    %1393 = vmatmul.mubr.f32.gmra.mrb[0].mxu0 %v1392
    %v1394 = vpop.f32.mrb[0].mxu0
    %v1395 = vadd.f32 %v1314, %v1394
    %v1396 = vpop.f32.mrb[0].mxu0
    %1397 = vdwg.mxu0
    %1398 = vmatprep.subr.mxu0 0.0
    %v1399 = vand.u32 %v1306, 4294901760
    %v1400 = vsub.f32 %v1306, %v1399
    %v1401 = vand.u32 %v1400, 4294901760
    %v1402 = vsub.f32 %v1400, %v1401
    %v1403 = vand.u32 %v1402, 4294901760
    %1404 = vmatpush1.msra.mxu0 %v1403
    %1405 = vmatprep.subr.mxu0 0.0
    %v1406 = vand.u32 %v1307, 4294901760
    %v1407 = vsub.f32 %v1307, %v1406
    %v1408 = vand.u32 %v1407, 4294901760
    %v1409 = vsub.f32 %v1407, %v1408
    %v1410 = vand.u32 %v1409, 4294901760
    %1411 = vmatpush1.msra.mxu0 %v1410
    %1412 = vmatprep.subr.mxu0 0.0
    %v1413 = vand.u32 %v1308, 4294901760
    %v1414 = vsub.f32 %v1308, %v1413
    %v1415 = vand.u32 %v1414, 4294901760
    %v1416 = vsub.f32 %v1414, %v1415
    %v1417 = vand.u32 %v1416, 4294901760
    %1418 = vmatpush1.msra.mxu0 %v1417
    %1419 = vmatprep.subr.mxu0 0.0
    %v1420 = vand.u32 %v1309, 4294901760
    %v1421 = vsub.f32 %v1309, %v1420
    %v1422 = vand.u32 %v1421, 4294901760
    %v1423 = vsub.f32 %v1421, %v1422
    %v1424 = vand.u32 %v1423, 4294901760
    %1425 = vmatpush1.msra.mxu0 %v1424
    %1426 = vmatprep.subr.mxu0 0.0
    %1427 = vmatpush1.msra.mxu0 0.0
    %1428 = vmatprep.subr.mxu0 0.0
    %1429 = vmatpush1.msra.mxu0 0.0
    %1430 = vmatprep.subr.mxu0 0.0
    %1431 = vmatpush1.msra.mxu0 0.0
    %1432 = vmatprep.subr.mxu0 0.0
    %1433 = vmatpush1.msra.mxu0 0.0
    %1434 = vmatprep.subr.mxu0 0.0
    %1435 = vmatpush1.msra.mxu0 0.0
    %1436 = vmatprep.subr.mxu0 0.0
    %1437 = vmatpush1.msra.mxu0 0.0
    %1438 = vmatprep.subr.mxu0 0.0
    %1439 = vmatpush1.msra.mxu0 0.0
    %1440 = vmatprep.subr.mxu0 0.0
    %1441 = vmatpush1.msra.mxu0 0.0
    %1442 = vmatprep.subr.mxu0 0.0
    %1443 = vmatpush1.msra.mxu0 0.0
    %1444 = vmatprep.subr.mxu0 0.0
    %1445 = vmatpush1.msra.mxu0 0.0
    %1446 = vmatprep.subr.mxu0 0.0
    %1447 = vmatpush1.msra.mxu0 0.0
    %1448 = vmatprep.subr.mxu0 0.0
    %1449 = vmatpush1.msra.mxu0 0.0
    %1450 = vmatprep.subr.mxu0 0.0
    %1451 = vmatpush1.msra.mxu0 0.0
    %1452 = vmatprep.subr.mxu0 0.0
    %1453 = vmatpush1.msra.mxu0 0.0
    %1454 = vmatprep.subr.mxu0 0.0
    %1455 = vmatpush1.msra.mxu0 0.0
    %1456 = vmatprep.subr.mxu0 0.0
    %1457 = vmatpush1.msra.mxu0 0.0
    %1458 = vmatprep.subr.mxu0 0.0
    %1459 = vmatpush1.msra.mxu0 0.0
    %1460 = vmatprep.subr.mxu0 0.0
    %1461 = vmatpush1.msra.mxu0 0.0
    %1462 = vmatprep.subr.mxu0 0.0
    %1463 = vmatpush1.msra.mxu0 0.0
    %1464 = vmatprep.subr.mxu0 0.0
    %1465 = vmatpush1.msra.mxu0 0.0
    %1466 = vmatprep.subr.mxu0 0.0
    %1467 = vmatpush1.msra.mxu0 0.0
    %1468 = vmatprep.subr.mxu0 0.0
    %1469 = vmatpush1.msra.mxu0 0.0
    %1470 = vmatprep.subr.mxu0 0.0
    %1471 = vmatpush1.msra.mxu0 0.0
    %1472 = vmatprep.subr.mxu0 0.0
    %1473 = vmatpush1.msra.mxu0 0.0
    %1474 = vmatprep.subr.mxu0 0.0
    %1475 = vmatpush1.msra.mxu0 0.0
    %1476 = vmatprep.subr.mxu0 0.0
    %1477 = vmatpush1.msra.mxu0 0.0
    %1478 = vmatprep.subr.mxu0 0.0
    %1479 = vmatpush1.msra.mxu0 0.0
    %1480 = vmatprep.subr.mxu0 0.0
    %1481 = vmatpush1.msra.mxu0 0.0
    %1482 = vmatprep.mubr.f32.mxu0 0.0
    %v1483 = vand.u32 %v1317, 4294901760
    %1484 = vmatmul.mubr.f32.gmra.mrb[0].mxu0 %v1483
    %v1485 = vpop.f32.mrb[0].mxu0
    %v1486 = vadd.f32 %v1395, %v1485
    %v1487 = vpop.f32.mrb[0].mxu0
    %1488 = vdwg.mxu0
    %1489 = vmatprep.subr.mxu0 0.0
    %v1490 = vand.u32 %v1306, 4294901760
    %v1491 = vsub.f32 %v1306, %v1490
    %1492 = vmatpush1.msra.mxu0 %v1491
    %1493 = vmatprep.subr.mxu0 0.0
    %v1494 = vand.u32 %v1307, 4294901760
    %v1495 = vsub.f32 %v1307, %v1494
    %1496 = vmatpush1.msra.mxu0 %v1495
    %1497 = vmatprep.subr.mxu0 0.0
    %v1498 = vand.u32 %v1308, 4294901760
    %v1499 = vsub.f32 %v1308, %v1498
    %1500 = vmatpush1.msra.mxu0 %v1499
    %1501 = vmatprep.subr.mxu0 0.0
    %v1502 = vand.u32 %v1309, 4294901760
    %v1503 = vsub.f32 %v1309, %v1502
    %1504 = vmatpush1.msra.mxu0 %v1503
    %1505 = vmatprep.subr.mxu0 0.0
    %1506 = vmatpush1.msra.mxu0 0.0
    %1507 = vmatprep.subr.mxu0 0.0
    %1508 = vmatpush1.msra.mxu0 0.0
    %1509 = vmatprep.subr.mxu0 0.0
    %1510 = vmatpush1.msra.mxu0 0.0
    %1511 = vmatprep.subr.mxu0 0.0
    %1512 = vmatpush1.msra.mxu0 0.0
    %1513 = vmatprep.subr.mxu0 0.0
    %1514 = vmatpush1.msra.mxu0 0.0
    %1515 = vmatprep.subr.mxu0 0.0
    %1516 = vmatpush1.msra.mxu0 0.0
    %1517 = vmatprep.subr.mxu0 0.0
    %1518 = vmatpush1.msra.mxu0 0.0
    %1519 = vmatprep.subr.mxu0 0.0
    %1520 = vmatpush1.msra.mxu0 0.0
    %1521 = vmatprep.subr.mxu0 0.0
    %1522 = vmatpush1.msra.mxu0 0.0
    %1523 = vmatprep.subr.mxu0 0.0
    %1524 = vmatpush1.msra.mxu0 0.0
    %1525 = vmatprep.subr.mxu0 0.0
    %1526 = vmatpush1.msra.mxu0 0.0
    %1527 = vmatprep.subr.mxu0 0.0
    %1528 = vmatpush1.msra.mxu0 0.0
    %1529 = vmatprep.subr.mxu0 0.0
    %1530 = vmatpush1.msra.mxu0 0.0
    %1531 = vmatprep.subr.mxu0 0.0
    %1532 = vmatpush1.msra.mxu0 0.0
    %1533 = vmatprep.subr.mxu0 0.0
    %1534 = vmatpush1.msra.mxu0 0.0
    %1535 = vmatprep.subr.mxu0 0.0
    %1536 = vmatpush1.msra.mxu0 0.0
    %1537 = vmatprep.subr.mxu0 0.0
    %1538 = vmatpush1.msra.mxu0 0.0
    %1539 = vmatprep.subr.mxu0 0.0
    %1540 = vmatpush1.msra.mxu0 0.0
    %1541 = vmatprep.subr.mxu0 0.0
    %1542 = vmatpush1.msra.mxu0 0.0
    %1543 = vmatprep.subr.mxu0 0.0
    %1544 = vmatpush1.msra.mxu0 0.0
    %1545 = vmatprep.subr.mxu0 0.0
    %1546 = vmatpush1.msra.mxu0 0.0
    %1547 = vmatprep.subr.mxu0 0.0
    %1548 = vmatpush1.msra.mxu0 0.0
    %1549 = vmatprep.subr.mxu0 0.0
    %1550 = vmatpush1.msra.mxu0 0.0
    %1551 = vmatprep.subr.mxu0 0.0
    %1552 = vmatpush1.msra.mxu0 0.0
    %1553 = vmatprep.subr.mxu0 0.0
    %1554 = vmatpush1.msra.mxu0 0.0
    %1555 = vmatprep.subr.mxu0 0.0
    %1556 = vmatpush1.msra.mxu0 0.0
    %1557 = vmatprep.subr.mxu0 0.0
    %1558 = vmatpush1.msra.mxu0 0.0
    %1559 = vmatprep.subr.mxu0 0.0
    %1560 = vmatpush1.msra.mxu0 0.0
    %1561 = vmatprep.mubr.f32.mxu0 0.0
    %v1562 = vand.u32 %v1317, 4294901760
    %v1563 = vsub.f32 %v1317, %v1562
    %1564 = vmatmul.mubr.f32.gmra.mrb[0].mxu0 %v1563
    %v1565 = vpop.f32.mrb[0].mxu0
    %v1566 = vadd.f32 %v1486, %v1565
    %v1567 = vpop.f32.mrb[0].mxu0
    %1568 = vdwg.mxu0
    %1569 = vmatprep.subr.mxu0 0.0
    %v1570 = vand.u32 %v1306, 4294901760
    %1571 = vmatpush1.msra.mxu0 %v1570
    %1572 = vmatprep.subr.mxu0 0.0
    %v1573 = vand.u32 %v1307, 4294901760
    %1574 = vmatpush1.msra.mxu0 %v1573
    %1575 = vmatprep.subr.mxu0 0.0
    %v1576 = vand.u32 %v1308, 4294901760
    %1577 = vmatpush1.msra.mxu0 %v1576
    %1578 = vmatprep.subr.mxu0 0.0
    %v1579 = vand.u32 %v1309, 4294901760
    %1580 = vmatpush1.msra.mxu0 %v1579
    %1581 = vmatprep.subr.mxu0 0.0
    %1582 = vmatpush1.msra.mxu0 0.0
    %1583 = vmatprep.subr.mxu0 0.0
    %1584 = vmatpush1.msra.mxu0 0.0
    %1585 = vmatprep.subr.mxu0 0.0
    %1586 = vmatpush1.msra.mxu0 0.0
    %1587 = vmatprep.subr.mxu0 0.0
    %1588 = vmatpush1.msra.mxu0 0.0
    %1589 = vmatprep.subr.mxu0 0.0
    %1590 = vmatpush1.msra.mxu0 0.0
    %1591 = vmatprep.subr.mxu0 0.0
    %1592 = vmatpush1.msra.mxu0 0.0
    %1593 = vmatprep.subr.mxu0 0.0
    %1594 = vmatpush1.msra.mxu0 0.0
    %1595 = vmatprep.subr.mxu0 0.0
    %1596 = vmatpush1.msra.mxu0 0.0
    %1597 = vmatprep.subr.mxu0 0.0
    %1598 = vmatpush1.msra.mxu0 0.0
    %1599 = vmatprep.subr.mxu0 0.0
    %1600 = vmatpush1.msra.mxu0 0.0
    %1601 = vmatprep.subr.mxu0 0.0
    %1602 = vmatpush1.msra.mxu0 0.0
    %1603 = vmatprep.subr.mxu0 0.0
    %1604 = vmatpush1.msra.mxu0 0.0
    %1605 = vmatprep.subr.mxu0 0.0
    %1606 = vmatpush1.msra.mxu0 0.0
    %1607 = vmatprep.subr.mxu0 0.0
    %1608 = vmatpush1.msra.mxu0 0.0
    %1609 = vmatprep.subr.mxu0 0.0
    %1610 = vmatpush1.msra.mxu0 0.0
    %1611 = vmatprep.subr.mxu0 0.0
    %1612 = vmatpush1.msra.mxu0 0.0
    %1613 = vmatprep.subr.mxu0 0.0
    %1614 = vmatpush1.msra.mxu0 0.0
    %1615 = vmatprep.subr.mxu0 0.0
    %1616 = vmatpush1.msra.mxu0 0.0
    %1617 = vmatprep.subr.mxu0 0.0
    %1618 = vmatpush1.msra.mxu0 0.0
    %1619 = vmatprep.subr.mxu0 0.0
    %1620 = vmatpush1.msra.mxu0 0.0
    %1621 = vmatprep.subr.mxu0 0.0
    %1622 = vmatpush1.msra.mxu0 0.0
    %1623 = vmatprep.subr.mxu0 0.0
    %1624 = vmatpush1.msra.mxu0 0.0
    %1625 = vmatprep.subr.mxu0 0.0
    %1626 = vmatpush1.msra.mxu0 0.0
    %1627 = vmatprep.subr.mxu0 0.0
    %1628 = vmatpush1.msra.mxu0 0.0
    %1629 = vmatprep.subr.mxu0 0.0
    %1630 = vmatpush1.msra.mxu0 0.0
    %1631 = vmatprep.subr.mxu0 0.0
    %1632 = vmatpush1.msra.mxu0 0.0
    %1633 = vmatprep.subr.mxu0 0.0
    %1634 = vmatpush1.msra.mxu0 0.0
    %1635 = vmatprep.subr.mxu0 0.0
    %1636 = vmatpush1.msra.mxu0 0.0
    %1637 = vmatprep.mubr.f32.mxu0 0.0
    %v1638 = vand.u32 %v1317, 4294901760
    %v1639 = vsub.f32 %v1317, %v1638
    %v1640 = vand.u32 %v1639, 4294901760
    %1641 = vmatmul.mubr.f32.gmra.mrb[0].mxu0 %v1640
    %v1642 = vpop.f32.mrb[0].mxu0
    %v1643 = vadd.f32 %v1566, %v1642
    %v1644 = vpop.f32.mrb[0].mxu0
    %1645 = vdwg.mxu0
    %1646 = vmatprep.subr.mxu0 0.0
    %v1647 = vand.u32 %v1306, 4294901760
    %v1648 = vsub.f32 %v1306, %v1647
    %v1649 = vand.u32 %v1648, 4294901760
    %1650 = vmatpush1.msra.mxu0 %v1649
    %1651 = vmatprep.subr.mxu0 0.0
    %v1652 = vand.u32 %v1307, 4294901760
    %v1653 = vsub.f32 %v1307, %v1652
    %v1654 = vand.u32 %v1653, 4294901760
    %1655 = vmatpush1.msra.mxu0 %v1654
    %1656 = vmatprep.subr.mxu0 0.0
    %v1657 = vand.u32 %v1308, 4294901760
    %v1658 = vsub.f32 %v1308, %v1657
    %v1659 = vand.u32 %v1658, 4294901760
    %1660 = vmatpush1.msra.mxu0 %v1659
    %1661 = vmatprep.subr.mxu0 0.0
    %v1662 = vand.u32 %v1309, 4294901760
    %v1663 = vsub.f32 %v1309, %v1662
    %v1664 = vand.u32 %v1663, 4294901760
    %1665 = vmatpush1.msra.mxu0 %v1664
    %1666 = vmatprep.subr.mxu0 0.0
    %1667 = vmatpush1.msra.mxu0 0.0
    %1668 = vmatprep.subr.mxu0 0.0
    %1669 = vmatpush1.msra.mxu0 0.0
    %1670 = vmatprep.subr.mxu0 0.0
    %1671 = vmatpush1.msra.mxu0 0.0
    %1672 = vmatprep.subr.mxu0 0.0
    %1673 = vmatpush1.msra.mxu0 0.0
    %1674 = vmatprep.subr.mxu0 0.0
    %1675 = vmatpush1.msra.mxu0 0.0
    %1676 = vmatprep.subr.mxu0 0.0
    %1677 = vmatpush1.msra.mxu0 0.0
    %1678 = vmatprep.subr.mxu0 0.0
    %1679 = vmatpush1.msra.mxu0 0.0
    %1680 = vmatprep.subr.mxu0 0.0
    %1681 = vmatpush1.msra.mxu0 0.0
    %1682 = vmatprep.subr.mxu0 0.0
    %1683 = vmatpush1.msra.mxu0 0.0
    %1684 = vmatprep.subr.mxu0 0.0
    %1685 = vmatpush1.msra.mxu0 0.0
    %1686 = vmatprep.subr.mxu0 0.0
    %1687 = vmatpush1.msra.mxu0 0.0
    %1688 = vmatprep.subr.mxu0 0.0
    %1689 = vmatpush1.msra.mxu0 0.0
    %1690 = vmatprep.subr.mxu0 0.0
    %1691 = vmatpush1.msra.mxu0 0.0
    %1692 = vmatprep.subr.mxu0 0.0
    %1693 = vmatpush1.msra.mxu0 0.0
    %1694 = vmatprep.subr.mxu0 0.0
    %1695 = vmatpush1.msra.mxu0 0.0
    %1696 = vmatprep.subr.mxu0 0.0
    %1697 = vmatpush1.msra.mxu0 0.0
    %1698 = vmatprep.subr.mxu0 0.0
    %1699 = vmatpush1.msra.mxu0 0.0
    %1700 = vmatprep.subr.mxu0 0.0
    %1701 = vmatpush1.msra.mxu0 0.0
    %1702 = vmatprep.subr.mxu0 0.0
    %1703 = vmatpush1.msra.mxu0 0.0
    %1704 = vmatprep.subr.mxu0 0.0
    %1705 = vmatpush1.msra.mxu0 0.0
    %1706 = vmatprep.subr.mxu0 0.0
    %1707 = vmatpush1.msra.mxu0 0.0
    %1708 = vmatprep.subr.mxu0 0.0
    %1709 = vmatpush1.msra.mxu0 0.0
    %1710 = vmatprep.subr.mxu0 0.0
    %1711 = vmatpush1.msra.mxu0 0.0
    %1712 = vmatprep.subr.mxu0 0.0
    %1713 = vmatpush1.msra.mxu0 0.0
    %1714 = vmatprep.subr.mxu0 0.0
    %1715 = vmatpush1.msra.mxu0 0.0
    %1716 = vmatprep.subr.mxu0 0.0
    %1717 = vmatpush1.msra.mxu0 0.0
    %1718 = vmatprep.subr.mxu0 0.0
    %1719 = vmatpush1.msra.mxu0 0.0
    %1720 = vmatprep.subr.mxu0 0.0
    %1721 = vmatpush1.msra.mxu0 0.0
    %1722 = vmatprep.mubr.f32.mxu0 0.0
    %v1723 = vand.u32 %v1317, 4294901760
    %1724 = vmatmul.mubr.f32.gmra.mrb[0].mxu0 %v1723
    %v1725 = vpop.f32.mrb[0].mxu0
    %v1726 = vadd.f32 %v1643, %v1725
    %v1727 = vpop.f32.mrb[0].mxu0
    %1728 = vdwg.mxu0
    %1729 = vmatprep.subr.mxu0 0.0
    %v1730 = vand.u32 %v1306, 4294901760
    %1731 = vmatpush1.msra.mxu0 %v1730
    %1732 = vmatprep.subr.mxu0 0.0
    %v1733 = vand.u32 %v1307, 4294901760
    %1734 = vmatpush1.msra.mxu0 %v1733
    %1735 = vmatprep.subr.mxu0 0.0
    %v1736 = vand.u32 %v1308, 4294901760
    %1737 = vmatpush1.msra.mxu0 %v1736
    %1738 = vmatprep.subr.mxu0 0.0
    %v1739 = vand.u32 %v1309, 4294901760
    %1740 = vmatpush1.msra.mxu0 %v1739
    %1741 = vmatprep.subr.mxu0 0.0
    %1742 = vmatpush1.msra.mxu0 0.0
    %1743 = vmatprep.subr.mxu0 0.0
    %1744 = vmatpush1.msra.mxu0 0.0
    %1745 = vmatprep.subr.mxu0 0.0
    %1746 = vmatpush1.msra.mxu0 0.0
    %1747 = vmatprep.subr.mxu0 0.0
    %1748 = vmatpush1.msra.mxu0 0.0
    %1749 = vmatprep.subr.mxu0 0.0
    %1750 = vmatpush1.msra.mxu0 0.0
    %1751 = vmatprep.subr.mxu0 0.0
    %1752 = vmatpush1.msra.mxu0 0.0
    %1753 = vmatprep.subr.mxu0 0.0
    %1754 = vmatpush1.msra.mxu0 0.0
    %1755 = vmatprep.subr.mxu0 0.0
    %1756 = vmatpush1.msra.mxu0 0.0
    %1757 = vmatprep.subr.mxu0 0.0
    %1758 = vmatpush1.msra.mxu0 0.0
    %1759 = vmatprep.subr.mxu0 0.0
    %1760 = vmatpush1.msra.mxu0 0.0
    %1761 = vmatprep.subr.mxu0 0.0
    %1762 = vmatpush1.msra.mxu0 0.0
    %1763 = vmatprep.subr.mxu0 0.0
    %1764 = vmatpush1.msra.mxu0 0.0
    %1765 = vmatprep.subr.mxu0 0.0
    %1766 = vmatpush1.msra.mxu0 0.0
    %1767 = vmatprep.subr.mxu0 0.0
    %1768 = vmatpush1.msra.mxu0 0.0
    %1769 = vmatprep.subr.mxu0 0.0
    %1770 = vmatpush1.msra.mxu0 0.0
    %1771 = vmatprep.subr.mxu0 0.0
    %1772 = vmatpush1.msra.mxu0 0.0
    %1773 = vmatprep.subr.mxu0 0.0
    %1774 = vmatpush1.msra.mxu0 0.0
    %1775 = vmatprep.subr.mxu0 0.0
    %1776 = vmatpush1.msra.mxu0 0.0
    %1777 = vmatprep.subr.mxu0 0.0
    %1778 = vmatpush1.msra.mxu0 0.0
    %1779 = vmatprep.subr.mxu0 0.0
    %1780 = vmatpush1.msra.mxu0 0.0
    %1781 = vmatprep.subr.mxu0 0.0
    %1782 = vmatpush1.msra.mxu0 0.0
    %1783 = vmatprep.subr.mxu0 0.0
    %1784 = vmatpush1.msra.mxu0 0.0
    %1785 = vmatprep.subr.mxu0 0.0
    %1786 = vmatpush1.msra.mxu0 0.0
    %1787 = vmatprep.subr.mxu0 0.0
    %1788 = vmatpush1.msra.mxu0 0.0
    %1789 = vmatprep.subr.mxu0 0.0
    %1790 = vmatpush1.msra.mxu0 0.0
    %1791 = vmatprep.subr.mxu0 0.0
    %1792 = vmatpush1.msra.mxu0 0.0
    %1793 = vmatprep.subr.mxu0 0.0
    %1794 = vmatpush1.msra.mxu0 0.0
    %1795 = vmatprep.subr.mxu0 0.0
    %1796 = vmatpush1.msra.mxu0 0.0
    %1797 = vmatprep.mubr.f32.mxu0 0.0
    %v1798 = vand.u32 %v1317, 4294901760
    %1799 = vmatmul.mubr.f32.gmra.mrb[0].mxu0 %v1798
    %v1800 = vpop.f32.mrb[0].mxu0
    %v1801 = vadd.f32 %v1726, %v1800
    %v1802 = vpop.f32.mrb[0].mxu0
    %1803 = vdwg.mxu0
    %v1804 = vld [vmem:[%s5] sm:$0xff]
    %1806 = vset.pattern.permute.xlu0 0
    %1807 = vperm.xlu0 %1806, %v36
    %v1808 = vpop.permute.xlu0 %1807
    %v1810 = vmul.f32 %v1808, %v1804
    %v1811 = vadd.f32 %v1801, %v1810
    %vm1812 = vcmask 130048
    %1813 = vst.msk [vmem:[#allocation2] sm:$0xff] %vm1812, %v1811
    %1815 = vset.pattern.permute.xlu0 0
    %1816 = vperm.xlu0 %1815, %v37
    %v1817 = vpop.permute.xlu0 %1816
    %v1819 = vmul.f32 %v1804, %v1817
    %1820 = vst.msk [vmem:[#allocation4] sm:$0xff] %vm1812, %v1819
    // Predicated region
    $region26: #{siminet_forward.1} parent=1 // pred_check
      _
    $region27: #{siminet_forward.1} parent=1 // pred_check_branch
      %1822 = sbr.rel (0) target = $region29
    $region28: #{siminet_forward.1} parent=1 // pred_region
      %s1824 = ssub.s32 128, 128
      %1825 = vsyncadd [#allocation3], %s1824
      %s1827 = sshll.u32 [#allocation2], 4
      %s1828 = int_to_ptr.vmem [resolvable:$true] %s1827
      %1830 = dma.vmem_to_hbm [thread:$0]  %s1828, 128, %s6, [#allocation3]
    $region29: #{siminet_forward.1} parent=1 // pred_fallthru
      _
    // Predicated region
    $region30: #{siminet_forward.1} parent=1 // pred_check
      _
    $region31: #{siminet_forward.1} parent=1 // pred_check_branch
      %1832 = sbr.rel (0) target = $region33
    $region32: #{siminet_forward.1} parent=1 // pred_region
      %s1834 = ssub.s32 128, 128
      %1835 = vsyncadd [#allocation5], %s1834
      %s1837 = sshll.u32 [#allocation4], 4
      %s1838 = int_to_ptr.vmem [resolvable:$true] %s1837
      %1840 = dma.vmem_to_hbm [thread:$0]  %s1838, 128, %s7, [#allocation5]
    $region33: #{siminet_forward.1} parent=1 // pred_fallthru
      _
    // Predicated region
    $region34: #{siminet_forward.1} parent=1 // pred_check
      _
    $region35: #{siminet_forward.1} parent=1 // pred_check_branch
      %1842 = sbr.rel (0) target = $region37
    $region36: #{siminet_forward.1} parent=1 // pred_region
      %1843 = dma.done [#allocation3], 128
    $region37: #{siminet_forward.1} parent=1 // pred_fallthru
      _
    // Predicated region
    $region38: #{siminet_forward.1} parent=1 // pred_check
      _
    $region39: #{siminet_forward.1} parent=1 // pred_check_branch
      %1845 = sbr.rel (0) target = $region41
    $region40: #{siminet_forward.1} parent=1 // pred_region
      %1846 = dma.done [#allocation5], 128
    $region41: #{siminet_forward.1} parent=1 // pred_fallthru
      _
    %1847 = vsyncpa [#allocation3], 1
    %1848 = vsyncpa [#allocation5], 1

</llo_original>
